<compile_context>
chip_gen: v7x
topology: tpu7x:2x2x1
jax: 0.10.0
libtpu: 0.0.40
codegen_flags: <defaults>
</compile_context>

<pallas_src>
import jax
import jax.numpy as jnp
from jax.experimental import pallas as pl
from jax.experimental.pallas import tpu as pltpu

_HI = jax.lax.Precision.HIGHEST
_EPS = 1e-5
_KW = 13                 # conv1 temporal kernel width
_G = 40                  # number of conv channels
_POOL_W, _POOL_S = 35, 7
_NCPAD = 128             # lane-dense class padding for the output slab


def _round_up(n, m):
    return ((n + m - 1) // m) * m


def _shallow_convnet_kernel(patch_ref, wconv_ref, pool_ref, w2_ref, mask_ref,
                            rmat_ref, smat_ref, bfc_ref, out_ref):
    """Bt batch elements per grid step.

    patch_ref: (Bt*Tpad, CKpad) bf16  im2col patches (+1.0 bias column, zero padded)
    wconv_ref: (CKpad, G)       bf16  conv1*conv2*BN folded weight (+bias row)
    pool_ref:  (Bt*P, Bt*Tpad)  f32   block-diagonal average-pool matrix
    w2_ref:    (G, P*NC)        f32   fc weight, W2[g, p*NC+n] = fc_w[n, g*P+p]
    mask_ref:  (Bt*P, P*NC)     f32   row selector ((row mod P) == p')
    rmat_ref:  (P*NC, NCPAD)    f32   lane-group sum + class pad to 128 lanes
    smat_ref:  (Bt, Bt*P)       f32   per-batch row-sum selector
    bfc_ref:   (1, NCPAD)       f32   fc bias (padded class lanes = -1e30)
    out_ref:   (Bt, NCPAD)      f32   softmax probabilities (pad lanes ~ 0)
    """
    # conv1 + conv2 + BatchNorm(eval) (+ bias via the 1.0 column) as ONE bf16 matmul.
    y = jnp.dot(patch_ref[...], wconv_ref[...],
                preferred_element_type=jnp.float32)            # (Bt*Tpad, G) f32
    y = y * y                                                  # torch.square

    # AvgPool2d((1,35), stride=(1,7)) for all Bt elements: block-diagonal pool matmul.
    pooled = jnp.dot(pool_ref[...], y,
                     preferred_element_type=jnp.float32)       # (Bt*P, G)
    act = jnp.log(jnp.clip(pooled, 1e-7, 1e4))                 # dropout = identity (eval)

    # fc: logits[b,n] = sum_{p,g} act[b*P+p, g] * fc_w[n, g*P+p]
    # expressed as 3 small dense matmuls (no serialized micro-matmul loop, no relayout):
    #   z[r, p'*NC+n]   = sum_g act[r,g] * W2[g, p'*NC+n]
    #   zr[r, n]        = sum_{p'} (z * mask)[r, p'*NC+n]   (keeps only p' == r mod P)
    #   logits[b, n]    = sum_{r in batch b} zr[r, n] + bias[n]
    z = jnp.dot(act, w2_ref[...], preferred_element_type=jnp.float32)      # (Bt*P, P*NC)
    zr = jnp.dot(z * mask_ref[...], rmat_ref[...],
                 preferred_element_type=jnp.float32)                       # (Bt*P, NCPAD)
    logits = jnp.dot(smat_ref[...], zr,
                     preferred_element_type=jnp.float32) + bfc_ref[...]    # (Bt, NCPAD)

    # softmax over classes (padded lanes have -1e30 bias -> exp underflows to 0).
    m = jnp.max(logits, axis=-1, keepdims=True)
    e = jnp.exp(logits - m)
    out_ref[...] = e * pl.reciprocal(jnp.sum(e, axis=-1, keepdims=True), approx=True)


def fold_params(params, Chans, Samples, Bt=8):
    """One-time host-side preprocessing (hoisted out of the per-call path)."""
    T = Samples - (_KW - 1)                  # conv1 'valid' output width
    Tpad = _round_up(T, 128)                 # clean unmasked tiles / full MXU M pass
    P = (T - _POOL_W) // _POOL_S + 1         # pooled width
    CK = Chans * _KW
    CKpad = _round_up(CK + 1, 128)           # +1 bias column, padded to 128-multiple
    NC = params["fc_w"].shape[0]
    assert NC <= _NCPAD
    f32 = jnp.float32

    w1 = params["conv1_w"][:, 0, 0, :]       # (G, 13)
    b1 = params["conv1_b"]                   # (G,)
    w2 = params["conv2_w"][:, :, :, 0]       # (G, G, Chans)

    # Combined conv weight W[c*13+k, g] = sum_f w2[g,f,c]*w1[f,k]; bias through conv2.
    wcomb = jnp.einsum("gfc,fk->ckg", w2, w1, precision=_HI).reshape(CK, _G)
    bcomb = jnp.einsum("gfc,f->g", w2, b1, precision=_HI)

    # Fold eval-mode BatchNorm; bias lives on row CK (matching the 1.0 patch column).
    s = params["bn_gamma"] / jnp.sqrt(params["bn_var"] + _EPS)
    t = params["bn_beta"] - params["bn_mean"] * s
    wconv = jnp.zeros((CKpad, _G), f32)
    wconv = wconv.at[:CK].set(wcomb * s[None, :])
    wconv = wconv.at[CK].set(bcomb * s + t)
    wconv = wconv.astype(jnp.bfloat16)

    # Block-diagonal average-pool matrix (Bt*P, Bt*Tpad); padded t columns are zero.
    t_idx = jnp.arange(Tpad)[None, :]
    p_idx = jnp.arange(P)[:, None]
    pool1 = jnp.where(
        (t_idx >= _POOL_S * p_idx) & (t_idx < _POOL_S * p_idx + _POOL_W),
        1.0 / _POOL_W, 0.0).astype(f32)                       # (P, Tpad)
    bigpool = jnp.kron(jnp.eye(Bt, dtype=f32), pool1)          # (Bt*P, Bt*Tpad)

    # fc weight reorder: W2[g, p*NC+n] = fc_w[n, g*P+p] (PyTorch flatten order g*P+p).
    w2fc = params["fc_w"].reshape(NC, _G, P).transpose(1, 2, 0).reshape(_G, P * NC)

    # Constant selector matrices for the 3-matmul fc formulation.
    r = jnp.arange(Bt * P)
    colz = jnp.arange(P * NC)
    mask = ((r[:, None] % P) == (colz[None, :] // NC)).astype(f32)       # (Bt*P, P*NC)
    rmat = ((colz[:, None] % NC) == jnp.arange(_NCPAD)[None, :]).astype(f32)
    smat = (jnp.arange(Bt)[:, None] == (r[None, :] // P)).astype(f32)    # (Bt, Bt*P)
    bfc = jnp.full((1, _NCPAD), -1e30, f32).at[0, :NC].set(params["fc_b"])

    return dict(wconv=wconv, bigpool=bigpool, w2fc=w2fc, mask=mask, rmat=rmat,
                smat=smat, bfc=bfc, T=T, Tpad=Tpad, P=P, CK=CK, CKpad=CKpad,
                NC=NC, Bt=Bt)


def shallow_convnet_forward(x, folded):
    """x: (B, 1, Chans, Samples) float32 -> (B, nb_classes) softmax probabilities."""
    B = x.shape[0]
    Bt, T, Tpad = folded["Bt"], folded["T"], folded["Tpad"]
    CK, CKpad, P, NC = folded["CK"], folded["CKpad"], folded["P"], folded["NC"]
    Bpad = _round_up(B, Bt)

    # Wrapper-side im2col (layout plumbing): patches[b, t, c*13+k] = x[b,0,c,t+k];
    # extra 1.0 column carries the folded conv/BN bias; zero-pad t->Tpad, K->CKpad, B->Bpad.
    xs = x[:, 0]                                                         # (B, C, S)
    cols = jnp.stack([xs[:, :, k:k + T] for k in range(_KW)], axis=-1)   # (B, C, T, 13)
    patches = cols.transpose(0, 2, 1, 3).reshape(B, T, CK)
    patches = jnp.concatenate([patches, jnp.ones((B, T, 1), patches.dtype)], axis=-1)
    patches = jnp.pad(patches, ((0, Bpad - B), (0, Tpad - T), (0, CKpad - CK - 1)))
    patches2d = patches.reshape(Bpad * Tpad, CKpad).astype(jnp.bfloat16)

    out = pl.pallas_call(
        _shallow_convnet_kernel,
        out_shape=jax.ShapeDtypeStruct((Bpad, _NCPAD), jnp.float32),
        grid=(Bpad // Bt,),
        in_specs=[
            pl.BlockSpec((Bt * Tpad, CKpad), lambda i: (i, 0)),   # per-step patches
            pl.BlockSpec((CKpad, _G), lambda i: (0, 0)),          # resident weights ↓
            pl.BlockSpec((Bt * P, Bt * Tpad), lambda i: (0, 0)),
            pl.BlockSpec((_G, P * NC), lambda i: (0, 0)),
            pl.BlockSpec((Bt * P, P * NC), lambda i: (0, 0)),
            pl.BlockSpec((P * NC, _NCPAD), lambda i: (0, 0)),
            pl.BlockSpec((Bt, Bt * P), lambda i: (0, 0)),
            pl.BlockSpec((1, _NCPAD), lambda i: (0, 0)),
        ],
        out_specs=pl.BlockSpec((Bt, _NCPAD), lambda i: (i, 0)),   # lane-dense output
        compiler_params=pltpu.CompilerParams(
            dimension_semantics=("parallel",)),
    )(patches2d, folded["wconv"], folded["bigpool"], folded["w2fc"],
      folded["mask"], folded["rmat"], folded["smat"], folded["bfc"])
    return out[:B, :NC]


def make_params(key, Chans=16, Samples=128, nb_classes=4):
    T = Samples - (_KW - 1)
    P = (T - _POOL_W) // _POOL_S + 1
    ks = jax.random.split(key, 9)
    f32 = jnp.float32
    return {
        "conv1_w": 0.10 * jax.random.normal(ks[0], (_G, 1, 1, _KW), f32),
        "conv1_b": 0.10 * jax.random.normal(ks[1], (_G,), f32),
        "conv2_w": 0.11 * jax.random.normal(ks[2], (_G, _G, Chans, 1), f32),  # bias=False
        "bn_gamma": 1.0 + 0.1 * jax.random.normal(ks[3], (_G,), f32),
        "bn_beta": 0.1 * jax.random.normal(ks[4], (_G,), f32),
        "bn_mean": 0.1 * jax.random.normal(ks[5], (_G,), f32),
        "bn_var": 1.0 + 0.1 * jnp.abs(jax.random.normal(ks[6], (_G,), f32)),
        "fc_w": 0.10 * jax.random.normal(ks[7], (nb_classes, _G * P), f32),
        "fc_b": 0.10 * jax.random.normal(ks[8], (nb_classes,), f32),
    }


def reference_forward(x, params):
    """Pure-JAX f32 reference matching eval-mode PyTorch semantics."""
    B, _, C, S = x.shape
    T = S - (_KW - 1)
    w1 = params["conv1_w"][:, 0, 0, :]                 # (G, 13)
    w2 = params["conv2_w"][:, :, :, 0]                 # (G, G, C)
    xs = x[:, 0]                                       # (B, C, S)
    cols = jnp.stack([xs[:, :, k:k + T] for k in range(_KW)], axis=-1)   # (B,C,T,13)
    conv1 = jnp.einsum("bctk,fk->bfct", cols, w1, precision=_HI) \
        + params["conv1_b"][None, :, None, None]
    conv2 = jnp.einsum("bfct,gfc->bgt", conv1, w2, precision=_HI)        # (B,G,T)
    s = params["bn_gamma"] / jnp.sqrt(params["bn_var"] + _EPS)
    t = params["bn_beta"] - params["bn_mean"] * s
    y = jnp.square(conv2 * s[None, :, None] + t[None, :, None])
    P = (T - _POOL_W) // _POOL_S + 1
    pooled = jnp.stack(
        [y[:, :, _POOL_S * p:_POOL_S * p + _POOL_W].mean(axis=-1) for p in range(P)],
        axis=-1)                                        # (B, G, P)
    act = jnp.log(jnp.clip(pooled, 1e-7, 1e4))
    flat = act.reshape(B, -1)                           # PyTorch flatten order g*P+p
    logits = jnp.dot(flat, params["fc_w"].T, precision=_HI) + params["fc_b"]
    e = jnp.exp(logits - logits.max(axis=1, keepdims=True))
    return e / e.sum(axis=1, keepdims=True)


if __name__ == "__main__":
    key = jax.random.PRNGKey(0)
    k_x, k_p = jax.random.split(key)

    B, CHANS, SAMPLES, NB_CLASSES = 16, 16, 128, 4
    x = jax.random.normal(k_x, (B, 1, CHANS, SAMPLES), jnp.float32)
    params = make_params(k_p, Chans=CHANS, Samples=SAMPLES, nb_classes=NB_CLASSES)

    folded = fold_params(params, Chans=CHANS, Samples=SAMPLES, Bt=8)   # hoisted, once
    fwd = jax.jit(lambda inp: shallow_convnet_forward(inp, folded))

    out = jax.block_until_ready(fwd(x))
    ref = jax.block_until_ready(reference_forward(x, params))

    assert out.shape == (B, NB_CLASSES), out.shape
    assert bool(jnp.all(jnp.isfinite(out)))
    # bf16 conv operands (f32 accumulation) vs f32 reference: expected softmax error is
    # ~1e-2 worst case at these scales; bound set at ~2-3x that margin.
    assert jnp.allclose(out, ref, atol=3e-2, rtol=3e-2), (out, ref)
    assert jnp.allclose(out.sum(axis=1), 1.0, atol=1e-2)

    print("KERNEL_OK")
</pallas_src>

<mosaic_0001>
module attributes {stable_mosaic.version = 11 : i64} {
  func.func @_shallow_convnet_kernel(%arg0: i32, %arg1: memref<1024x256xbf16, #tpu.memory_space<vmem>>, %arg2: memref<256x40xbf16, #tpu.memory_space<vmem>>, %arg3: memref<96x1024xf32, #tpu.memory_space<vmem>>, %arg4: memref<40x48xf32, #tpu.memory_space<vmem>>, %arg5: memref<96x48xf32, #tpu.memory_space<vmem>>, %arg6: memref<48x128xf32, #tpu.memory_space<vmem>>, %arg7: memref<8x96xf32, #tpu.memory_space<vmem>>, %arg8: memref<1x128xf32, #tpu.memory_space<vmem>>, %arg9: memref<8x128xf32, #tpu.memory_space<vmem>>) attributes {dimension_semantics = [#tpu.dimension_semantics<parallel>], iteration_bounds = array<i64: 2>, scalar_prefetch = 0 : i64, scratch_operands = 0 : i64, tpu.core_type = #tpu.core_type<tc>, window_params = [{transform_indices = @transform_0, window_bounds = array<i64: 1024, 256>}, {pipeline_mode = #tpu.pipeline_mode<synchronous>, transform_indices = @transform_1, window_bounds = array<i64: 256, 40>}, {pipeline_mode = #tpu.pipeline_mode<synchronous>, transform_indices = @transform_2, window_bounds = array<i64: 96, 1024>}, {pipeline_mode = #tpu.pipeline_mode<synchronous>, transform_indices = @transform_3, window_bounds = array<i64: 40, 48>}, {pipeline_mode = #tpu.pipeline_mode<synchronous>, transform_indices = @transform_4, window_bounds = array<i64: 96, 48>}, {pipeline_mode = #tpu.pipeline_mode<synchronous>, transform_indices = @transform_5, window_bounds = array<i64: 48, 128>}, {pipeline_mode = #tpu.pipeline_mode<synchronous>, transform_indices = @transform_6, window_bounds = array<i64: 8, 96>}, {pipeline_mode = #tpu.pipeline_mode<synchronous>, transform_indices = @transform_7, window_bounds = array<i64: 1, 128>}, {transform_indices = @transform_8, window_bounds = array<i64: 8, 128>}]} {
    %c0 = arith.constant 0 : index
    %c0_0 = arith.constant 0 : index
    %0 = vector.load %arg1[%c0, %c0_0] : memref<1024x256xbf16, #tpu.memory_space<vmem>>, vector<1024x256xbf16>
    %c0_1 = arith.constant 0 : index
    %c0_2 = arith.constant 0 : index
    %1 = vector.load %arg2[%c0_1, %c0_2] : memref<256x40xbf16, #tpu.memory_space<vmem>>, vector<256x40xbf16>
    %cst = arith.constant dense<0.000000e+00> : vector<1024x40xf32>
    %2 = tpu.matmul %0, %1, %cst {dimension_numbers = #tpu.dot_dimension_numbers<[1], [0], [0], [1], [0, 0, 1, 1], [], []>} : vector<1024x256xbf16>, vector<256x40xbf16>, vector<1024x40xf32> -> vector<1024x40xf32>
    %3 = arith.mulf %2, %2 : vector<1024x40xf32>
    %c0_3 = arith.constant 0 : index
    %c0_4 = arith.constant 0 : index
    %4 = vector.load %arg3[%c0_3, %c0_4] : memref<96x1024xf32, #tpu.memory_space<vmem>>, vector<96x1024xf32>
    %cst_5 = arith.constant dense<0.000000e+00> : vector<96x40xf32>
    %5 = tpu.matmul %4, %3, %cst_5 {dimension_numbers = #tpu.dot_dimension_numbers<[1], [0], [0], [1], [0, 0, 1, 1], [], []>} : vector<96x1024xf32>, vector<1024x40xf32>, vector<96x40xf32> -> vector<96x40xf32>
    %cst_6 = arith.constant 1.000000e-07 : f32
    %cst_7 = arith.constant 1.000000e+04 : f32
    %6 = vector.broadcast %cst_6 : f32 to vector<96x40xf32>
    %7 = arith.maximumf %6, %5 : vector<96x40xf32>
    %8 = vector.broadcast %cst_7 : f32 to vector<96x40xf32>
    %9 = arith.minimumf %8, %7 : vector<96x40xf32>
    %10 = math.log %9 : vector<96x40xf32>
    %c0_8 = arith.constant 0 : index
    %c0_9 = arith.constant 0 : index
    %11 = vector.load %arg4[%c0_8, %c0_9] : memref<40x48xf32, #tpu.memory_space<vmem>>, vector<40x48xf32>
    %cst_10 = arith.constant dense<0.000000e+00> : vector<96x48xf32>
    %12 = tpu.matmul %10, %11, %cst_10 {dimension_numbers = #tpu.dot_dimension_numbers<[1], [0], [0], [1], [0, 0, 1, 1], [], []>} : vector<96x40xf32>, vector<40x48xf32>, vector<96x48xf32> -> vector<96x48xf32>
    %c0_11 = arith.constant 0 : index
    %c0_12 = arith.constant 0 : index
    %13 = vector.load %arg5[%c0_11, %c0_12] : memref<96x48xf32, #tpu.memory_space<vmem>>, vector<96x48xf32>
    %14 = arith.mulf %12, %13 : vector<96x48xf32>
    %c0_13 = arith.constant 0 : index
    %c0_14 = arith.constant 0 : index
    %15 = vector.load %arg6[%c0_13, %c0_14] : memref<48x128xf32, #tpu.memory_space<vmem>>, vector<48x128xf32>
    %cst_15 = arith.constant dense<0.000000e+00> : vector<96x128xf32>
    %16 = tpu.matmul %14, %15, %cst_15 {dimension_numbers = #tpu.dot_dimension_numbers<[1], [0], [0], [1], [0, 0, 1, 1], [], []>} : vector<96x48xf32>, vector<48x128xf32>, vector<96x128xf32> -> vector<96x128xf32>
    %c0_16 = arith.constant 0 : index
    %c0_17 = arith.constant 0 : index
    %17 = vector.load %arg7[%c0_16, %c0_17] : memref<8x96xf32, #tpu.memory_space<vmem>>, vector<8x96xf32>
    %cst_18 = arith.constant dense<0.000000e+00> : vector<8x128xf32>
    %18 = tpu.matmul %17, %16, %cst_18 {dimension_numbers = #tpu.dot_dimension_numbers<[1], [0], [0], [1], [0, 0, 1, 1], [], []>} : vector<8x96xf32>, vector<96x128xf32>, vector<8x128xf32> -> vector<8x128xf32>
    %c0_19 = arith.constant 0 : index
    %c0_20 = arith.constant 0 : index
    %19 = vector.load %arg8[%c0_19, %c0_20] : memref<1x128xf32, #tpu.memory_space<vmem>>, vector<1x128xf32>
    %20 = vector.broadcast %19 : vector<1x128xf32> to vector<8x128xf32>
    %21 = arith.addf %18, %20 : vector<8x128xf32>
    %cst_21 = arith.constant dense<0xFF800000> : vector<8xf32>
    %22 = vector.multi_reduction <maximumf>, %21, %cst_21 [1] : vector<8x128xf32> to vector<8xf32>
    %23 = vector.shape_cast %22 : vector<8xf32> to vector<8x1xf32>
    %24 = vector.broadcast %23 : vector<8x1xf32> to vector<8x128xf32>
    %25 = arith.subf %21, %24 : vector<8x128xf32>
    %26 = math.exp %25 : vector<8x128xf32>
    %cst_22 = arith.constant dense<0.000000e+00> : vector<8xf32>
    %27 = vector.multi_reduction <add>, %26, %cst_22 [1] : vector<8x128xf32> to vector<8xf32>
    %28 = vector.shape_cast %27 : vector<8xf32> to vector<8x1xf32>
    %29 = tpu.reciprocal %28 {approx = true} : vector<8x1xf32> -> vector<8x1xf32>
    %30 = vector.broadcast %29 : vector<8x1xf32> to vector<8x128xf32>
    %31 = arith.mulf %26, %30 : vector<8x128xf32>
    %c0_23 = arith.constant 0 : index
    %c0_24 = arith.constant 0 : index
    %32 = vector.load %arg9[%c0_23, %c0_24] : memref<8x128xf32, #tpu.memory_space<vmem>>, vector<8x128xf32>
    tpu.vector_store %arg9[%c0_23, %c0_24], %31 {strides = array<i32>} : memref<8x128xf32, #tpu.memory_space<vmem>>, vector<8x128xf32>,
    return
  }
  func.func @transform_0(%arg0: i32) -> (i32, i32) {
    %c0_i32 = arith.constant 0 : i32
    %c0_i32_0 = arith.constant 0 : i32
    return %arg0, %c0_i32 : i32, i32
  }
  func.func @transform_1(%arg0: i32) -> (i32, i32) {
    %c0_i32 = arith.constant 0 : i32
    %c0_i32_0 = arith.constant 0 : i32
    %c0_i32_1 = arith.constant 0 : i32
    return %c0_i32, %c0_i32_0 : i32, i32
  }
  func.func @transform_2(%arg0: i32) -> (i32, i32) {
    %c0_i32 = arith.constant 0 : i32
    %c0_i32_0 = arith.constant 0 : i32
    %c0_i32_1 = arith.constant 0 : i32
    return %c0_i32, %c0_i32_0 : i32, i32
  }
  func.func @transform_3(%arg0: i32) -> (i32, i32) {
    %c0_i32 = arith.constant 0 : i32
    %c0_i32_0 = arith.constant 0 : i32
    %c0_i32_1 = arith.constant 0 : i32
    return %c0_i32, %c0_i32_0 : i32, i32
  }
  func.func @transform_4(%arg0: i32) -> (i32, i32) {
    %c0_i32 = arith.constant 0 : i32
    %c0_i32_0 = arith.constant 0 : i32
    %c0_i32_1 = arith.constant 0 : i32
    return %c0_i32, %c0_i32_0 : i32, i32
  }
  func.func @transform_5(%arg0: i32) -> (i32, i32) {
    %c0_i32 = arith.constant 0 : i32
    %c0_i32_0 = arith.constant 0 : i32
    %c0_i32_1 = arith.constant 0 : i32
    return %c0_i32, %c0_i32_0 : i32, i32
  }
  func.func @transform_6(%arg0: i32) -> (i32, i32) {
    %c0_i32 = arith.constant 0 : i32
    %c0_i32_0 = arith.constant 0 : i32
    %c0_i32_1 = arith.constant 0 : i32
    return %c0_i32, %c0_i32_0 : i32, i32
  }
  func.func @transform_7(%arg0: i32) -> (i32, i32) {
    %c0_i32 = arith.constant 0 : i32
    %c0_i32_0 = arith.constant 0 : i32
    %c0_i32_1 = arith.constant 0 : i32
    return %c0_i32, %c0_i32_0 : i32, i32
  }
  func.func @transform_8(%arg0: i32) -> (i32, i32) {
    %c0_i32 = arith.constant 0 : i32
    %c0_i32_0 = arith.constant 0 : i32
    return %arg0, %c0_i32 : i32, i32
  }
}

</mosaic_0001>

<llo_original>
// kernel: _lambda_.1
$region0: #{_lambda_.1}
  #allocation0 [shape = 'u32[]', space=smem, size = 0x4, offset = 0x4, fixed_abs, tag = 'smem constant byte address 0x4 - core index']
  #allocation1 [shape = 'u32[144,128]{1,0:T(1,128)}', space=vmem, size = 0x12000, scoped, tag = 'internal scratch']
  %s0 = inlined_call_operand.vmem [shape: bf16[2048,256], index: 0, kind: input, shape index: {}]
  %s1 = inlined_call_operand.vmem [shape: bf16[256,40], index: 1, kind: input, shape index: {}]
  %s2 = inlined_call_operand.vmem [shape: f32[96,1024], index: 2, kind: input, shape index: {}]
  %s3 = inlined_call_operand.vmem [shape: f32[40,48], index: 3, kind: input, shape index: {}]
  %s4 = inlined_call_operand.vmem [shape: f32[96,48], index: 4, kind: input, shape index: {}]
  %s5 = inlined_call_operand.vmem [shape: f32[48,128], index: 5, kind: input, shape index: {}]
  %s6 = inlined_call_operand.vmem [shape: f32[8,96], index: 6, kind: input, shape index: {}]
  %s7 = inlined_call_operand.vmem [shape: f32[1,128], index: 7, kind: input, shape index: {}]
  %s8 = inlined_call_operand.vmem [shape: f32[16,128], index: 8, kind: output, shape index: {}]
  %s9 = sld [smem:[#allocation0]]
  $region65: #{_lambda_.1} parent=0
    _
  %s11 = ssub.s32 1, %s9
  %s12 = scalar_select 0, %s11, %s9
  loop: start=0, step=1, limit=4
  $region2: #{_lambda_.1} parent=0 // loop_pre_header
    _
  $region3: #{_lambda_.1} parent=0 // loop_header
    %s14 = sphi 0, %s18
    %p15 = scmp.ge.s32.totalorder %s14, 4
    %s24 = sphi 0, %s26
    %s27 = sphi 0, %s24
    %s28 = sphi 0, %s27
    %s44 = sphi 0, %s28
    %s48 = sphi 0, %s48
    %s50 = sphi 0, %s48
    %s51 = sphi 0, %s50
    %s65 = sphi 0, %s51
    %s69 = sphi 0, %s69
    %s71 = sphi 0, %s69
    %s72 = sphi 0, %s71
    %s86 = sphi 0, %s72
    %s90 = sphi 0, %s90
    %s92 = sphi 0, %s90
    %s93 = sphi 0, %s92
    %s107 = sphi 0, %s93
    %s111 = sphi 0, %s111
    %s113 = sphi 0, %s111
    %s114 = sphi 0, %s113
    %s128 = sphi 0, %s114
    %s132 = sphi 0, %s132
    %s134 = sphi 0, %s132
    %s135 = sphi 0, %s134
    %s149 = sphi 0, %s135
    %s153 = sphi 0, %s153
    %s155 = sphi 0, %s153
    %s156 = sphi 0, %s155
    %s170 = sphi 0, %s156
    %s174 = sphi 0, %s174
    %s176 = sphi 0, %s174
    %s177 = sphi 0, %s176
    %s191 = sphi 0, %s177
    %s197 = sphi 0, %s199
    %s200 = sphi 0, %s197
    %s201 = sphi 0, %s200
    %s217 = sphi 0, %s201
  $region4: #{_lambda_.1} parent=0 // loop_header_branch
    %17 = sbr.rel (%p15) target = $region8
  $region5: #{_lambda_.1} parent=0 // loop_body
    %s19 = ssub.s32 %s14, 1
    %s20 = ssub.s32 %s14, 2
    %s21 = sadd.s32 %s14, 1
    %s22 = ssub.s32 %s14, %s21
    %p23 = scmp.eq.s32.totalorder %s22, 0
    %s25 = sadd.s32 %s24, 1
    %s26 = scalar_select %p23, %s24, %s25
    %p29 = pneg %p23
    %p30 = scmp.eq.s32.totalorder %s14, 1
    %p31 = por %p29, %p30
    %p32 = scmp.ne.s32.totalorder %s24, %s27
    %p33 = scmp.eq.s32.totalorder %s14, 0
    %p34 = por %p32, %p33
    %p35 = scmp.ne.s32.totalorder %s24, %s27
    %p36 = scmp.eq.s32.totalorder %s19, 1
    %p37 = por %p35, %p36
    %p38 = scmp.ne.s32.totalorder %s27, %s28
    %p39 = scmp.eq.s32.totalorder %s19, 0
    %p40 = por %p38, %p39
    %p41 = scmp.ne.s32.totalorder %s27, %s28
    %p42 = scmp.eq.s32.totalorder %s20, 1
    %p43 = por %p41, %p42
    %p45 = scmp.ne.s32.totalorder %s28, %s44
    %p46 = scmp.eq.s32.totalorder %s20, 0
    %p47 = por %p45, %p46
    %s49 = sadd.s32 %s48, 1
    %p52 = scmp.eq.s32.totalorder %s14, 1
    %p53 = scmp.ne.s32.totalorder %s48, %s50
    %p54 = scmp.eq.s32.totalorder %s14, 0
    %p55 = por %p53, %p54
    %p56 = scmp.ne.s32.totalorder %s48, %s50
    %p57 = scmp.eq.s32.totalorder %s19, 1
    %p58 = por %p56, %p57
    %p59 = scmp.ne.s32.totalorder %s50, %s51
    %p60 = scmp.eq.s32.totalorder %s19, 0
    %p61 = por %p59, %p60
    %p62 = scmp.ne.s32.totalorder %s50, %s51
    %p63 = scmp.eq.s32.totalorder %s20, 1
    %p64 = por %p62, %p63
    %p66 = scmp.ne.s32.totalorder %s51, %s65
    %p67 = scmp.eq.s32.totalorder %s20, 0
    %p68 = por %p66, %p67
    %s70 = sadd.s32 %s69, 1
    %p73 = scmp.eq.s32.totalorder %s14, 1
    %p74 = scmp.ne.s32.totalorder %s69, %s71
    %p75 = scmp.eq.s32.totalorder %s14, 0
    %p76 = por %p74, %p75
    %p77 = scmp.ne.s32.totalorder %s69, %s71
    %p78 = scmp.eq.s32.totalorder %s19, 1
    %p79 = por %p77, %p78
    %p80 = scmp.ne.s32.totalorder %s71, %s72
    %p81 = scmp.eq.s32.totalorder %s19, 0
    %p82 = por %p80, %p81
    %p83 = scmp.ne.s32.totalorder %s71, %s72
    %p84 = scmp.eq.s32.totalorder %s20, 1
    %p85 = por %p83, %p84
    %p87 = scmp.ne.s32.totalorder %s72, %s86
    %p88 = scmp.eq.s32.totalorder %s20, 0
    %p89 = por %p87, %p88
    %s91 = sadd.s32 %s90, 1
    %p94 = scmp.eq.s32.totalorder %s14, 1
    %p95 = scmp.ne.s32.totalorder %s90, %s92
    %p96 = scmp.eq.s32.totalorder %s14, 0
    %p97 = por %p95, %p96
    %p98 = scmp.ne.s32.totalorder %s90, %s92
    %p99 = scmp.eq.s32.totalorder %s19, 1
    %p100 = por %p98, %p99
    %p101 = scmp.ne.s32.totalorder %s92, %s93
    %p102 = scmp.eq.s32.totalorder %s19, 0
    %p103 = por %p101, %p102
    %p104 = scmp.ne.s32.totalorder %s92, %s93
    %p105 = scmp.eq.s32.totalorder %s20, 1
    %p106 = por %p104, %p105
    %p108 = scmp.ne.s32.totalorder %s93, %s107
    %p109 = scmp.eq.s32.totalorder %s20, 0
    %p110 = por %p108, %p109
    %s112 = sadd.s32 %s111, 1
    %p115 = scmp.eq.s32.totalorder %s14, 1
    %p116 = scmp.ne.s32.totalorder %s111, %s113
    %p117 = scmp.eq.s32.totalorder %s14, 0
    %p118 = por %p116, %p117
    %p119 = scmp.ne.s32.totalorder %s111, %s113
    %p120 = scmp.eq.s32.totalorder %s19, 1
    %p121 = por %p119, %p120
    %p122 = scmp.ne.s32.totalorder %s113, %s114
    %p123 = scmp.eq.s32.totalorder %s19, 0
    %p124 = por %p122, %p123
    %p125 = scmp.ne.s32.totalorder %s113, %s114
    %p126 = scmp.eq.s32.totalorder %s20, 1
    %p127 = por %p125, %p126
    %p129 = scmp.ne.s32.totalorder %s114, %s128
    %p130 = scmp.eq.s32.totalorder %s20, 0
    %p131 = por %p129, %p130
    %s133 = sadd.s32 %s132, 1
    %p136 = scmp.eq.s32.totalorder %s14, 1
    %p137 = scmp.ne.s32.totalorder %s132, %s134
    %p138 = scmp.eq.s32.totalorder %s14, 0
    %p139 = por %p137, %p138
    %p140 = scmp.ne.s32.totalorder %s132, %s134
    %p141 = scmp.eq.s32.totalorder %s19, 1
    %p142 = por %p140, %p141
    %p143 = scmp.ne.s32.totalorder %s134, %s135
    %p144 = scmp.eq.s32.totalorder %s19, 0
    %p145 = por %p143, %p144
    %p146 = scmp.ne.s32.totalorder %s134, %s135
    %p147 = scmp.eq.s32.totalorder %s20, 1
    %p148 = por %p146, %p147
    %p150 = scmp.ne.s32.totalorder %s135, %s149
    %p151 = scmp.eq.s32.totalorder %s20, 0
    %p152 = por %p150, %p151
    %s154 = sadd.s32 %s153, 1
    %p157 = scmp.eq.s32.totalorder %s14, 1
    %p158 = scmp.ne.s32.totalorder %s153, %s155
    %p159 = scmp.eq.s32.totalorder %s14, 0
    %p160 = por %p158, %p159
    %p161 = scmp.ne.s32.totalorder %s153, %s155
    %p162 = scmp.eq.s32.totalorder %s19, 1
    %p163 = por %p161, %p162
    %p164 = scmp.ne.s32.totalorder %s155, %s156
    %p165 = scmp.eq.s32.totalorder %s19, 0
    %p166 = por %p164, %p165
    %p167 = scmp.ne.s32.totalorder %s155, %s156
    %p168 = scmp.eq.s32.totalorder %s20, 1
    %p169 = por %p167, %p168
    %p171 = scmp.ne.s32.totalorder %s156, %s170
    %p172 = scmp.eq.s32.totalorder %s20, 0
    %p173 = por %p171, %p172
    %s175 = sadd.s32 %s174, 1
    %p178 = scmp.eq.s32.totalorder %s14, 1
    %p179 = scmp.ne.s32.totalorder %s174, %s176
    %p180 = scmp.eq.s32.totalorder %s14, 0
    %p181 = por %p179, %p180
    %p182 = scmp.ne.s32.totalorder %s174, %s176
    %p183 = scmp.eq.s32.totalorder %s19, 1
    %p184 = por %p182, %p183
    %p185 = scmp.ne.s32.totalorder %s176, %s177
    %p186 = scmp.eq.s32.totalorder %s19, 0
    %p187 = por %p185, %p186
    %p188 = scmp.ne.s32.totalorder %s176, %s177
    %p189 = scmp.eq.s32.totalorder %s20, 1
    %p190 = por %p188, %p189
    %p192 = scmp.ne.s32.totalorder %s177, %s191
    %p193 = scmp.eq.s32.totalorder %s20, 0
    %p194 = por %p192, %p193
    %s195 = ssub.s32 %s14, %s21
    %p196 = scmp.eq.s32.totalorder %s195, 0
    %s198 = sadd.s32 %s197, 1
    %s199 = scalar_select %p196, %s197, %s198
    %p202 = pneg %p196
    %p203 = scmp.eq.s32.totalorder %s14, 1
    %p204 = por %p202, %p203
    %p205 = scmp.ne.s32.totalorder %s197, %s200
    %p206 = scmp.eq.s32.totalorder %s14, 0
    %p207 = por %p205, %p206
    %p208 = scmp.ne.s32.totalorder %s197, %s200
    %p209 = scmp.eq.s32.totalorder %s19, 1
    %p210 = por %p208, %p209
    %p211 = scmp.ne.s32.totalorder %s200, %s201
    %p212 = scmp.eq.s32.totalorder %s19, 0
    %p213 = por %p211, %p212
    %p214 = scmp.ne.s32.totalorder %s200, %s201
    %p215 = scmp.eq.s32.totalorder %s20, 1
    %p216 = por %p214, %p215
    %p218 = scmp.ne.s32.totalorder %s201, %s217
    %p219 = scmp.eq.s32.totalorder %s20, 0
    %p220 = por %p218, %p219
    %p221 = scmp.le.s32.totalorder 1, %s14
    %p222 = scmp.lt.s32.totalorder %s14, 3
    %p223 = pnand %p221, %p222
    %p224 = pneg %p223
    // Predicated region
    $region9: #{_lambda_.1} parent=5 // pred_check
      _
    $region10: #{_lambda_.1} parent=5 // pred_check_branch
      %226 = sbr.rel (%p223) target = $region12
    $region11: #{_lambda_.1} parent=5 // pred_region
      %s227 = ssub.s32 %s14, 1
      // Predicated region
      $region13: #{_lambda_.1} parent=11 // pred_check
        %p228 = pneg %p61
      $region14: #{_lambda_.1} parent=11 // pred_check_branch
        %230 = sbr.rel (%p228) target = $region16
      $region15: #{_lambda_.1} parent=11 // pred_region
        _
      $region16: #{_lambda_.1} parent=11 // pred_fallthru
        _
      // Predicated region
      $region17: #{_lambda_.1} parent=11 // pred_check
        %p231 = pneg %p82
      $region18: #{_lambda_.1} parent=11 // pred_check_branch
        %233 = sbr.rel (%p231) target = $region20
      $region19: #{_lambda_.1} parent=11 // pred_region
        _
      $region20: #{_lambda_.1} parent=11 // pred_fallthru
        _
      // Predicated region
      $region21: #{_lambda_.1} parent=11 // pred_check
        %p234 = pneg %p103
      $region22: #{_lambda_.1} parent=11 // pred_check_branch
        %236 = sbr.rel (%p234) target = $region24
      $region23: #{_lambda_.1} parent=11 // pred_region
        _
      $region24: #{_lambda_.1} parent=11 // pred_fallthru
        _
      // Predicated region
      $region25: #{_lambda_.1} parent=11 // pred_check
        %p237 = pneg %p124
      $region26: #{_lambda_.1} parent=11 // pred_check_branch
        %239 = sbr.rel (%p237) target = $region28
      $region27: #{_lambda_.1} parent=11 // pred_region
        _
      $region28: #{_lambda_.1} parent=11 // pred_fallthru
        _
      // Predicated region
      $region29: #{_lambda_.1} parent=11 // pred_check
        %p240 = pneg %p145
      $region30: #{_lambda_.1} parent=11 // pred_check_branch
        %242 = sbr.rel (%p240) target = $region32
      $region31: #{_lambda_.1} parent=11 // pred_region
        _
      $region32: #{_lambda_.1} parent=11 // pred_fallthru
        _
      // Predicated region
      $region33: #{_lambda_.1} parent=11 // pred_check
        %p243 = pneg %p166
      $region34: #{_lambda_.1} parent=11 // pred_check_branch
        %245 = sbr.rel (%p243) target = $region36
      $region35: #{_lambda_.1} parent=11 // pred_region
        _
      $region36: #{_lambda_.1} parent=11 // pred_fallthru
        _
      // Predicated region
      $region37: #{_lambda_.1} parent=11 // pred_check
        %p246 = pneg %p187
      $region38: #{_lambda_.1} parent=11 // pred_check_branch
        %248 = sbr.rel (%p246) target = $region40
      $region39: #{_lambda_.1} parent=11 // pred_region
        _
      $region40: #{_lambda_.1} parent=11 // pred_fallthru
        _
    $region12: #{_lambda_.1} parent=5 // pred_fallthru
      _
    %p249 = scmp.lt.s32.totalorder %s14, 2
    // Predicated region
    $region41: #{_lambda_.1} parent=5 // pred_check
      %p250 = pneg %p249
    $region42: #{_lambda_.1} parent=5 // pred_check_branch
      %252 = sbr.rel (%p250) target = $region44
    $region43: #{_lambda_.1} parent=5 // pred_region
      // Predicated region
      $region45: #{_lambda_.1} parent=43 // pred_check
        %p253 = pneg %p34
      $region46: #{_lambda_.1} parent=43 // pred_check_branch
        %255 = sbr.rel (%p253) target = $region48
      $region47: #{_lambda_.1} parent=43 // pred_region
        %s256 = smul.u32 128, %s14
        %p257 = scmp.lt.s32.totalorder %s256, 255
        %s258 = scalar_select %p257, %s256, 255
        %s259 = smul.addr %s258, 2
        %s260 = smul.addr %s259, 4
        %s261 = scalar_lea.vmem %s0, %s260
        %s262 = smul.u32 128, %s14
      $region48: #{_lambda_.1} parent=43 // pred_fallthru
        _
    $region44: #{_lambda_.1} parent=5 // pred_fallthru
      _
    %p263 = scmp.le.s32.totalorder 1, %s14
    %p264 = scmp.lt.s32.totalorder %s14, 3
    %p265 = pnand %p263, %p264
    %p266 = pneg %p265
    // Predicated region
    $region49: #{_lambda_.1} parent=5 // pred_check
      _
    $region50: #{_lambda_.1} parent=5 // pred_check_branch
      %268 = sbr.rel (%p265) target = $region52
    $region51: #{_lambda_.1} parent=5 // pred_region
      %s269 = ssub.s32 %s14, 1
      %s270 = smul.u32 128, %s19
      %p271 = scmp.lt.s32.totalorder %s270, 255
      %s272 = scalar_select %p271, %s270, 255
      %s273 = smul.addr %s272, 2
      %s274 = smul.addr %s273, 4
      %s275 = scalar_lea.vmem %s0, %s274
      %p276 = pneg %p40
      %p277 = pneg %p37
      %p278 = pneg %p61
      %p279 = pneg %p58
      %p280 = pneg %p82
      %p281 = pneg %p79
      %p282 = pneg %p103
      %p283 = pneg %p100
      %p284 = pneg %p124
      %p285 = pneg %p121
      %p286 = pneg %p145
      %p287 = pneg %p142
      %p288 = pneg %p166
      %p289 = pneg %p163
      %p290 = pneg %p187
      %p291 = pneg %p184
      %p292 = pneg %p213
      %p293 = pneg %p210
      %p294 = scmp.lt.s32.totalorder %s19, 1
      %s295 = scalar_select %p294, %s19, 1
      %s296 = smul.addr %s295, 8
      %s297 = scalar_lea.vmem %s8, %s296
      %s298 = smul.u32 128, %s19
      %p299 = scmp.lt.s32.totalorder %s298, 255
      %s300 = scalar_select %p299, %s298, 255
      %s301 = smul.addr %s300, 2
      %s302 = smul.addr %s301, 4
      %s303 = scalar_lea.vmem %s0, %s302
      %s304 = smul.u32 128, %s19
      %p305 = scmp.lt.s32.totalorder %s19, 1
      %s306 = scalar_select %p305, %s19, 1
      %s307 = smul.addr %s306, 8
      %s308 = scalar_lea.vmem %s8, %s307
      %v310 = vld [vmem:[%s303] sm:$0xff]
      %v311 = vld [vmem:[%s303 + $0x8] sm:$0xff]
      %v312 = vld [vmem:[%s303 + $0x10] sm:$0xff]
      %v313 = vld [vmem:[%s303 + $0x18] sm:$0xff]
      %v314 = vld [vmem:[%s303 + $0x20] sm:$0xff]
      %v315 = vld [vmem:[%s303 + $0x28] sm:$0xff]
      %v316 = vld [vmem:[%s303 + $0x30] sm:$0xff]
      %v317 = vld [vmem:[%s303 + $0x38] sm:$0xff]
      %v318 = vld [vmem:[%s303 + $0x40] sm:$0xff]
      %v319 = vld [vmem:[%s303 + $0x48] sm:$0xff]
      %v320 = vld [vmem:[%s303 + $0x50] sm:$0xff]
      %v321 = vld [vmem:[%s303 + $0x58] sm:$0xff]
      %v322 = vld [vmem:[%s303 + $0x60] sm:$0xff]
      %v323 = vld [vmem:[%s303 + $0x68] sm:$0xff]
      %v324 = vld [vmem:[%s303 + $0x70] sm:$0xff]
      %v325 = vld [vmem:[%s303 + $0x78] sm:$0xff]
      %v326 = vld [vmem:[%s303 + $0x80] sm:$0xff]
      %v327 = vld [vmem:[%s303 + $0x88] sm:$0xff]
      %v328 = vld [vmem:[%s303 + $0x90] sm:$0xff]
      %v329 = vld [vmem:[%s303 + $0x98] sm:$0xff]
      %v330 = vld [vmem:[%s303 + $0xa0] sm:$0xff]
      %v331 = vld [vmem:[%s303 + $0xa8] sm:$0xff]
      %v332 = vld [vmem:[%s303 + $0xb0] sm:$0xff]
      %v333 = vld [vmem:[%s303 + $0xb8] sm:$0xff]
      %v334 = vld [vmem:[%s303 + $0xc0] sm:$0xff]
      %v335 = vld [vmem:[%s303 + $0xc8] sm:$0xff]
      %v336 = vld [vmem:[%s303 + $0xd0] sm:$0xff]
      %v337 = vld [vmem:[%s303 + $0xd8] sm:$0xff]
      %v338 = vld [vmem:[%s303 + $0xe0] sm:$0xff]
      %v339 = vld [vmem:[%s303 + $0xe8] sm:$0xff]
      %v340 = vld [vmem:[%s303 + $0xf0] sm:$0xff]
      %v341 = vld [vmem:[%s303 + $0xf8] sm:$0xff]
      %v342 = vld [vmem:[%s303 + $0x100] sm:$0xff]
      %v343 = vld [vmem:[%s303 + $0x108] sm:$0xff]
      %v344 = vld [vmem:[%s303 + $0x110] sm:$0xff]
      %v345 = vld [vmem:[%s303 + $0x118] sm:$0xff]
      %v346 = vld [vmem:[%s303 + $0x120] sm:$0xff]
      %v347 = vld [vmem:[%s303 + $0x128] sm:$0xff]
      %v348 = vld [vmem:[%s303 + $0x130] sm:$0xff]
      %v349 = vld [vmem:[%s303 + $0x138] sm:$0xff]
      %v350 = vld [vmem:[%s303 + $0x140] sm:$0xff]
      %v351 = vld [vmem:[%s303 + $0x148] sm:$0xff]
      %v352 = vld [vmem:[%s303 + $0x150] sm:$0xff]
      %v353 = vld [vmem:[%s303 + $0x158] sm:$0xff]
      %v354 = vld [vmem:[%s303 + $0x160] sm:$0xff]
      %v355 = vld [vmem:[%s303 + $0x168] sm:$0xff]
      %v356 = vld [vmem:[%s303 + $0x170] sm:$0xff]
      %v357 = vld [vmem:[%s303 + $0x178] sm:$0xff]
      %v358 = vld [vmem:[%s303 + $0x180] sm:$0xff]
      %v359 = vld [vmem:[%s303 + $0x188] sm:$0xff]
      %v360 = vld [vmem:[%s303 + $0x190] sm:$0xff]
      %v361 = vld [vmem:[%s303 + $0x198] sm:$0xff]
      %v362 = vld [vmem:[%s303 + $0x1a0] sm:$0xff]
      %v363 = vld [vmem:[%s303 + $0x1a8] sm:$0xff]
      %v364 = vld [vmem:[%s303 + $0x1b0] sm:$0xff]
      %v365 = vld [vmem:[%s303 + $0x1b8] sm:$0xff]
      %v366 = vld [vmem:[%s303 + $0x1c0] sm:$0xff]
      %v367 = vld [vmem:[%s303 + $0x1c8] sm:$0xff]
      %v368 = vld [vmem:[%s303 + $0x1d0] sm:$0xff]
      %v369 = vld [vmem:[%s303 + $0x1d8] sm:$0xff]
      %v370 = vld [vmem:[%s303 + $0x1e0] sm:$0xff]
      %v371 = vld [vmem:[%s303 + $0x1e8] sm:$0xff]
      %v372 = vld [vmem:[%s303 + $0x1f0] sm:$0xff]
      %v373 = vld [vmem:[%s303 + $0x1f8] sm:$0xff]
      %v374 = vld [vmem:[%s303 + $0x200] sm:$0xff]
      %v375 = vld [vmem:[%s303 + $0x208] sm:$0xff]
      %v376 = vld [vmem:[%s303 + $0x210] sm:$0xff]
      %v377 = vld [vmem:[%s303 + $0x218] sm:$0xff]
      %v378 = vld [vmem:[%s303 + $0x220] sm:$0xff]
      %v379 = vld [vmem:[%s303 + $0x228] sm:$0xff]
      %v380 = vld [vmem:[%s303 + $0x230] sm:$0xff]
      %v381 = vld [vmem:[%s303 + $0x238] sm:$0xff]
      %v382 = vld [vmem:[%s303 + $0x240] sm:$0xff]
      %v383 = vld [vmem:[%s303 + $0x248] sm:$0xff]
      %v384 = vld [vmem:[%s303 + $0x250] sm:$0xff]
      %v385 = vld [vmem:[%s303 + $0x258] sm:$0xff]
      %v386 = vld [vmem:[%s303 + $0x260] sm:$0xff]
      %v387 = vld [vmem:[%s303 + $0x268] sm:$0xff]
      %v388 = vld [vmem:[%s303 + $0x270] sm:$0xff]
      %v389 = vld [vmem:[%s303 + $0x278] sm:$0xff]
      %v390 = vld [vmem:[%s303 + $0x280] sm:$0xff]
      %v391 = vld [vmem:[%s303 + $0x288] sm:$0xff]
      %v392 = vld [vmem:[%s303 + $0x290] sm:$0xff]
      %v393 = vld [vmem:[%s303 + $0x298] sm:$0xff]
      %v394 = vld [vmem:[%s303 + $0x2a0] sm:$0xff]
      %v395 = vld [vmem:[%s303 + $0x2a8] sm:$0xff]
      %v396 = vld [vmem:[%s303 + $0x2b0] sm:$0xff]
      %v397 = vld [vmem:[%s303 + $0x2b8] sm:$0xff]
      %v398 = vld [vmem:[%s303 + $0x2c0] sm:$0xff]
      %v399 = vld [vmem:[%s303 + $0x2c8] sm:$0xff]
      %v400 = vld [vmem:[%s303 + $0x2d0] sm:$0xff]
      %v401 = vld [vmem:[%s303 + $0x2d8] sm:$0xff]
      %v402 = vld [vmem:[%s303 + $0x2e0] sm:$0xff]
      %v403 = vld [vmem:[%s303 + $0x2e8] sm:$0xff]
      %v404 = vld [vmem:[%s303 + $0x2f0] sm:$0xff]
      %v405 = vld [vmem:[%s303 + $0x2f8] sm:$0xff]
      %v406 = vld [vmem:[%s303 + $0x300] sm:$0xff]
      %v407 = vld [vmem:[%s303 + $0x308] sm:$0xff]
      %v408 = vld [vmem:[%s303 + $0x310] sm:$0xff]
      %v409 = vld [vmem:[%s303 + $0x318] sm:$0xff]
      %v410 = vld [vmem:[%s303 + $0x320] sm:$0xff]
      %v411 = vld [vmem:[%s303 + $0x328] sm:$0xff]
      %v412 = vld [vmem:[%s303 + $0x330] sm:$0xff]
      %v413 = vld [vmem:[%s303 + $0x338] sm:$0xff]
      %v414 = vld [vmem:[%s303 + $0x340] sm:$0xff]
      %v415 = vld [vmem:[%s303 + $0x348] sm:$0xff]
      %v416 = vld [vmem:[%s303 + $0x350] sm:$0xff]
      %v417 = vld [vmem:[%s303 + $0x358] sm:$0xff]
      %v418 = vld [vmem:[%s303 + $0x360] sm:$0xff]
      %v419 = vld [vmem:[%s303 + $0x368] sm:$0xff]
      %v420 = vld [vmem:[%s303 + $0x370] sm:$0xff]
      %v421 = vld [vmem:[%s303 + $0x378] sm:$0xff]
      %v422 = vld [vmem:[%s303 + $0x380] sm:$0xff]
      %v423 = vld [vmem:[%s303 + $0x388] sm:$0xff]
      %v424 = vld [vmem:[%s303 + $0x390] sm:$0xff]
      %v425 = vld [vmem:[%s303 + $0x398] sm:$0xff]
      %v426 = vld [vmem:[%s303 + $0x3a0] sm:$0xff]
      %v427 = vld [vmem:[%s303 + $0x3a8] sm:$0xff]
      %v428 = vld [vmem:[%s303 + $0x3b0] sm:$0xff]
      %v429 = vld [vmem:[%s303 + $0x3b8] sm:$0xff]
      %v430 = vld [vmem:[%s303 + $0x3c0] sm:$0xff]
      %v431 = vld [vmem:[%s303 + $0x3c8] sm:$0xff]
      %v432 = vld [vmem:[%s303 + $0x3d0] sm:$0xff]
      %v433 = vld [vmem:[%s303 + $0x3d8] sm:$0xff]
      %v434 = vld [vmem:[%s303 + $0x3e0] sm:$0xff]
      %v435 = vld [vmem:[%s303 + $0x3e8] sm:$0xff]
      %v436 = vld [vmem:[%s303 + $0x3f0] sm:$0xff]
      %v437 = vld [vmem:[%s303 + $0x3f8] sm:$0xff]
      %v438 = vld [vmem:[%s1] sm:$0xf]
      %v439 = vld [vmem:[%s1 + $0x4] sm:$0xf]
      %v440 = vld [vmem:[%s1 + $0x8] sm:$0xf]
      %v441 = vld [vmem:[%s1 + $0xc] sm:$0xf]
      %v442 = vld [vmem:[%s1 + $0x10] sm:$0xf]
      %v443 = vld [vmem:[%s1 + $0x14] sm:$0xf]
      %v444 = vld [vmem:[%s1 + $0x18] sm:$0xf]
      %v445 = vld [vmem:[%s1 + $0x1c] sm:$0xf]
      %v446 = vld [vmem:[%s1 + $0x20] sm:$0xf]
      %v447 = vld [vmem:[%s1 + $0x24] sm:$0xf]
      %v448 = vld [vmem:[%s1 + $0x28] sm:$0xf]
      %v449 = vld [vmem:[%s1 + $0x2c] sm:$0xf]
      %v450 = vld [vmem:[%s1 + $0x30] sm:$0xf]
      %v451 = vld [vmem:[%s1 + $0x34] sm:$0xf]
      %v452 = vld [vmem:[%s1 + $0x38] sm:$0xf]
      %v453 = vld [vmem:[%s1 + $0x3c] sm:$0xf]
      %v454 = vld [vmem:[%s1 + $0x40] sm:$0xf]
      %v455 = vld [vmem:[%s1 + $0x44] sm:$0xf]
      %v456 = vld [vmem:[%s1 + $0x48] sm:$0xf]
      %v457 = vld [vmem:[%s1 + $0x4c] sm:$0xf]
      %v458 = vld [vmem:[%s1 + $0x50] sm:$0xf]
      %v459 = vld [vmem:[%s1 + $0x54] sm:$0xf]
      %v460 = vld [vmem:[%s1 + $0x58] sm:$0xf]
      %v461 = vld [vmem:[%s1 + $0x5c] sm:$0xf]
      %v462 = vld [vmem:[%s1 + $0x60] sm:$0xf]
      %v463 = vld [vmem:[%s1 + $0x64] sm:$0xf]
      %v464 = vld [vmem:[%s1 + $0x68] sm:$0xf]
      %v465 = vld [vmem:[%s1 + $0x6c] sm:$0xf]
      %v466 = vld [vmem:[%s1 + $0x70] sm:$0xf]
      %v467 = vld [vmem:[%s1 + $0x74] sm:$0xf]
      %v468 = vld [vmem:[%s1 + $0x78] sm:$0xf]
      %v469 = vld [vmem:[%s1 + $0x7c] sm:$0xf]
      %v598 = vunpack.c.l.b16 %v310
      %v599 = vunpack.c.h.b16 %v310
      %v600 = vunpack.c.l.b16 %v311
      %v601 = vunpack.c.h.b16 %v311
      %v602 = vunpack.c.l.b16 %v312
      %v603 = vunpack.c.h.b16 %v312
      %v604 = vunpack.c.l.b16 %v313
      %v605 = vunpack.c.h.b16 %v313
      %v606 = vunpack.c.l.b16 %v314
      %v607 = vunpack.c.h.b16 %v314
      %v608 = vunpack.c.l.b16 %v315
      %v609 = vunpack.c.h.b16 %v315
      %v610 = vunpack.c.l.b16 %v316
      %v611 = vunpack.c.h.b16 %v316
      %v612 = vunpack.c.l.b16 %v317
      %v613 = vunpack.c.h.b16 %v317
      %v614 = vunpack.c.l.b16 %v318
      %v615 = vunpack.c.h.b16 %v318
      %v616 = vunpack.c.l.b16 %v319
      %v617 = vunpack.c.h.b16 %v319
      %v618 = vunpack.c.l.b16 %v320
      %v619 = vunpack.c.h.b16 %v320
      %v620 = vunpack.c.l.b16 %v321
      %v621 = vunpack.c.h.b16 %v321
      %v622 = vunpack.c.l.b16 %v322
      %v623 = vunpack.c.h.b16 %v322
      %v624 = vunpack.c.l.b16 %v323
      %v625 = vunpack.c.h.b16 %v323
      %v626 = vunpack.c.l.b16 %v324
      %v627 = vunpack.c.h.b16 %v324
      %v628 = vunpack.c.l.b16 %v325
      %v629 = vunpack.c.h.b16 %v325
      %v630 = vunpack.c.l.b16 %v326
      %v631 = vunpack.c.h.b16 %v326
      %v632 = vunpack.c.l.b16 %v327
      %v633 = vunpack.c.h.b16 %v327
      %v634 = vunpack.c.l.b16 %v328
      %v635 = vunpack.c.h.b16 %v328
      %v636 = vunpack.c.l.b16 %v329
      %v637 = vunpack.c.h.b16 %v329
      %v638 = vunpack.c.l.b16 %v330
      %v639 = vunpack.c.h.b16 %v330
      %v640 = vunpack.c.l.b16 %v331
      %v641 = vunpack.c.h.b16 %v331
      %v642 = vunpack.c.l.b16 %v332
      %v643 = vunpack.c.h.b16 %v332
      %v644 = vunpack.c.l.b16 %v333
      %v645 = vunpack.c.h.b16 %v333
      %v646 = vunpack.c.l.b16 %v334
      %v647 = vunpack.c.h.b16 %v334
      %v648 = vunpack.c.l.b16 %v335
      %v649 = vunpack.c.h.b16 %v335
      %v650 = vunpack.c.l.b16 %v336
      %v651 = vunpack.c.h.b16 %v336
      %v652 = vunpack.c.l.b16 %v337
      %v653 = vunpack.c.h.b16 %v337
      %v654 = vunpack.c.l.b16 %v338
      %v655 = vunpack.c.h.b16 %v338
      %v656 = vunpack.c.l.b16 %v339
      %v657 = vunpack.c.h.b16 %v339
      %v658 = vunpack.c.l.b16 %v340
      %v659 = vunpack.c.h.b16 %v340
      %v660 = vunpack.c.l.b16 %v341
      %v661 = vunpack.c.h.b16 %v341
      %v662 = vunpack.c.l.b16 %v342
      %v663 = vunpack.c.h.b16 %v342
      %v664 = vunpack.c.l.b16 %v343
      %v665 = vunpack.c.h.b16 %v343
      %v666 = vunpack.c.l.b16 %v344
      %v667 = vunpack.c.h.b16 %v344
      %v668 = vunpack.c.l.b16 %v345
      %v669 = vunpack.c.h.b16 %v345
      %v670 = vunpack.c.l.b16 %v346
      %v671 = vunpack.c.h.b16 %v346
      %v672 = vunpack.c.l.b16 %v347
      %v673 = vunpack.c.h.b16 %v347
      %v674 = vunpack.c.l.b16 %v348
      %v675 = vunpack.c.h.b16 %v348
      %v676 = vunpack.c.l.b16 %v349
      %v677 = vunpack.c.h.b16 %v349
      %v678 = vunpack.c.l.b16 %v350
      %v679 = vunpack.c.h.b16 %v350
      %v680 = vunpack.c.l.b16 %v351
      %v681 = vunpack.c.h.b16 %v351
      %v682 = vunpack.c.l.b16 %v352
      %v683 = vunpack.c.h.b16 %v352
      %v684 = vunpack.c.l.b16 %v353
      %v685 = vunpack.c.h.b16 %v353
      %v686 = vunpack.c.l.b16 %v354
      %v687 = vunpack.c.h.b16 %v354
      %v688 = vunpack.c.l.b16 %v355
      %v689 = vunpack.c.h.b16 %v355
      %v690 = vunpack.c.l.b16 %v356
      %v691 = vunpack.c.h.b16 %v356
      %v692 = vunpack.c.l.b16 %v357
      %v693 = vunpack.c.h.b16 %v357
      %v694 = vunpack.c.l.b16 %v358
      %v695 = vunpack.c.h.b16 %v358
      %v696 = vunpack.c.l.b16 %v359
      %v697 = vunpack.c.h.b16 %v359
      %v698 = vunpack.c.l.b16 %v360
      %v699 = vunpack.c.h.b16 %v360
      %v700 = vunpack.c.l.b16 %v361
      %v701 = vunpack.c.h.b16 %v361
      %v702 = vunpack.c.l.b16 %v362
      %v703 = vunpack.c.h.b16 %v362
      %v704 = vunpack.c.l.b16 %v363
      %v705 = vunpack.c.h.b16 %v363
      %v706 = vunpack.c.l.b16 %v364
      %v707 = vunpack.c.h.b16 %v364
      %v708 = vunpack.c.l.b16 %v365
      %v709 = vunpack.c.h.b16 %v365
      %v710 = vunpack.c.l.b16 %v366
      %v711 = vunpack.c.h.b16 %v366
      %v712 = vunpack.c.l.b16 %v367
      %v713 = vunpack.c.h.b16 %v367
      %v714 = vunpack.c.l.b16 %v368
      %v715 = vunpack.c.h.b16 %v368
      %v716 = vunpack.c.l.b16 %v369
      %v717 = vunpack.c.h.b16 %v369
      %v718 = vunpack.c.l.b16 %v370
      %v719 = vunpack.c.h.b16 %v370
      %v720 = vunpack.c.l.b16 %v371
      %v721 = vunpack.c.h.b16 %v371
      %v722 = vunpack.c.l.b16 %v372
      %v723 = vunpack.c.h.b16 %v372
      %v724 = vunpack.c.l.b16 %v373
      %v725 = vunpack.c.h.b16 %v373
      %v726 = vunpack.c.l.b16 %v374
      %v727 = vunpack.c.h.b16 %v374
      %v728 = vunpack.c.l.b16 %v375
      %v729 = vunpack.c.h.b16 %v375
      %v730 = vunpack.c.l.b16 %v376
      %v731 = vunpack.c.h.b16 %v376
      %v732 = vunpack.c.l.b16 %v377
      %v733 = vunpack.c.h.b16 %v377
      %v734 = vunpack.c.l.b16 %v378
      %v735 = vunpack.c.h.b16 %v378
      %v736 = vunpack.c.l.b16 %v379
      %v737 = vunpack.c.h.b16 %v379
      %v738 = vunpack.c.l.b16 %v380
      %v739 = vunpack.c.h.b16 %v380
      %v740 = vunpack.c.l.b16 %v381
      %v741 = vunpack.c.h.b16 %v381
      %v742 = vunpack.c.l.b16 %v382
      %v743 = vunpack.c.h.b16 %v382
      %v744 = vunpack.c.l.b16 %v383
      %v745 = vunpack.c.h.b16 %v383
      %v746 = vunpack.c.l.b16 %v384
      %v747 = vunpack.c.h.b16 %v384
      %v748 = vunpack.c.l.b16 %v385
      %v749 = vunpack.c.h.b16 %v385
      %v750 = vunpack.c.l.b16 %v386
      %v751 = vunpack.c.h.b16 %v386
      %v752 = vunpack.c.l.b16 %v387
      %v753 = vunpack.c.h.b16 %v387
      %v754 = vunpack.c.l.b16 %v388
      %v755 = vunpack.c.h.b16 %v388
      %v756 = vunpack.c.l.b16 %v389
      %v757 = vunpack.c.h.b16 %v389
      %v758 = vunpack.c.l.b16 %v390
      %v759 = vunpack.c.h.b16 %v390
      %v760 = vunpack.c.l.b16 %v391
      %v761 = vunpack.c.h.b16 %v391
      %v762 = vunpack.c.l.b16 %v392
      %v763 = vunpack.c.h.b16 %v392
      %v764 = vunpack.c.l.b16 %v393
      %v765 = vunpack.c.h.b16 %v393
      %v766 = vunpack.c.l.b16 %v394
      %v767 = vunpack.c.h.b16 %v394
      %v768 = vunpack.c.l.b16 %v395
      %v769 = vunpack.c.h.b16 %v395
      %v770 = vunpack.c.l.b16 %v396
      %v771 = vunpack.c.h.b16 %v396
      %v772 = vunpack.c.l.b16 %v397
      %v773 = vunpack.c.h.b16 %v397
      %v774 = vunpack.c.l.b16 %v398
      %v775 = vunpack.c.h.b16 %v398
      %v776 = vunpack.c.l.b16 %v399
      %v777 = vunpack.c.h.b16 %v399
      %v778 = vunpack.c.l.b16 %v400
      %v779 = vunpack.c.h.b16 %v400
      %v780 = vunpack.c.l.b16 %v401
      %v781 = vunpack.c.h.b16 %v401
      %v782 = vunpack.c.l.b16 %v402
      %v783 = vunpack.c.h.b16 %v402
      %v784 = vunpack.c.l.b16 %v403
      %v785 = vunpack.c.h.b16 %v403
      %v786 = vunpack.c.l.b16 %v404
      %v787 = vunpack.c.h.b16 %v404
      %v788 = vunpack.c.l.b16 %v405
      %v789 = vunpack.c.h.b16 %v405
      %v790 = vunpack.c.l.b16 %v406
      %v791 = vunpack.c.h.b16 %v406
      %v792 = vunpack.c.l.b16 %v407
      %v793 = vunpack.c.h.b16 %v407
      %v794 = vunpack.c.l.b16 %v408
      %v795 = vunpack.c.h.b16 %v408
      %v796 = vunpack.c.l.b16 %v409
      %v797 = vunpack.c.h.b16 %v409
      %v798 = vunpack.c.l.b16 %v410
      %v799 = vunpack.c.h.b16 %v410
      %v800 = vunpack.c.l.b16 %v411
      %v801 = vunpack.c.h.b16 %v411
      %v802 = vunpack.c.l.b16 %v412
      %v803 = vunpack.c.h.b16 %v412
      %v804 = vunpack.c.l.b16 %v413
      %v805 = vunpack.c.h.b16 %v413
      %v806 = vunpack.c.l.b16 %v414
      %v807 = vunpack.c.h.b16 %v414
      %v808 = vunpack.c.l.b16 %v415
      %v809 = vunpack.c.h.b16 %v415
      %v810 = vunpack.c.l.b16 %v416
      %v811 = vunpack.c.h.b16 %v416
      %v812 = vunpack.c.l.b16 %v417
      %v813 = vunpack.c.h.b16 %v417
      %v814 = vunpack.c.l.b16 %v418
      %v815 = vunpack.c.h.b16 %v418
      %v816 = vunpack.c.l.b16 %v419
      %v817 = vunpack.c.h.b16 %v419
      %v818 = vunpack.c.l.b16 %v420
      %v819 = vunpack.c.h.b16 %v420
      %v820 = vunpack.c.l.b16 %v421
      %v821 = vunpack.c.h.b16 %v421
      %v822 = vunpack.c.l.b16 %v422
      %v823 = vunpack.c.h.b16 %v422
      %v824 = vunpack.c.l.b16 %v423
      %v825 = vunpack.c.h.b16 %v423
      %v826 = vunpack.c.l.b16 %v424
      %v827 = vunpack.c.h.b16 %v424
      %v828 = vunpack.c.l.b16 %v425
      %v829 = vunpack.c.h.b16 %v425
      %v830 = vunpack.c.l.b16 %v426
      %v831 = vunpack.c.h.b16 %v426
      %v832 = vunpack.c.l.b16 %v427
      %v833 = vunpack.c.h.b16 %v427
      %v834 = vunpack.c.l.b16 %v428
      %v835 = vunpack.c.h.b16 %v428
      %v836 = vunpack.c.l.b16 %v429
      %v837 = vunpack.c.h.b16 %v429
      %v838 = vunpack.c.l.b16 %v430
      %v839 = vunpack.c.h.b16 %v430
      %v840 = vunpack.c.l.b16 %v431
      %v841 = vunpack.c.h.b16 %v431
      %v842 = vunpack.c.l.b16 %v432
      %v843 = vunpack.c.h.b16 %v432
      %v844 = vunpack.c.l.b16 %v433
      %v845 = vunpack.c.h.b16 %v433
      %v846 = vunpack.c.l.b16 %v434
      %v847 = vunpack.c.h.b16 %v434
      %v848 = vunpack.c.l.b16 %v435
      %v849 = vunpack.c.h.b16 %v435
      %v850 = vunpack.c.l.b16 %v436
      %v851 = vunpack.c.h.b16 %v436
      %v852 = vunpack.c.l.b16 %v437
      %v853 = vunpack.c.h.b16 %v437
      %v854 = vpack.c.b16 %v600, %v598
      %v855 = vpack.c.b16 %v601, %v599
      %v856 = vpack.c.b16 %v604, %v602
      %v857 = vpack.c.b16 %v605, %v603
      %v858 = vpack.c.b16 %v608, %v606
      %v859 = vpack.c.b16 %v609, %v607
      %v860 = vpack.c.b16 %v612, %v610
      %v861 = vpack.c.b16 %v613, %v611
      %v862 = vpack.c.b16 %v616, %v614
      %v863 = vpack.c.b16 %v617, %v615
      %v864 = vpack.c.b16 %v620, %v618
      %v865 = vpack.c.b16 %v621, %v619
      %v866 = vpack.c.b16 %v624, %v622
      %v867 = vpack.c.b16 %v625, %v623
      %v868 = vpack.c.b16 %v628, %v626
      %v869 = vpack.c.b16 %v629, %v627
      %v870 = vpack.c.b16 %v632, %v630
      %v871 = vpack.c.b16 %v633, %v631
      %v872 = vpack.c.b16 %v636, %v634
      %v873 = vpack.c.b16 %v637, %v635
      %v874 = vpack.c.b16 %v640, %v638
      %v875 = vpack.c.b16 %v641, %v639
      %v876 = vpack.c.b16 %v644, %v642
      %v877 = vpack.c.b16 %v645, %v643
      %v878 = vpack.c.b16 %v648, %v646
      %v879 = vpack.c.b16 %v649, %v647
      %v880 = vpack.c.b16 %v652, %v650
      %v881 = vpack.c.b16 %v653, %v651
      %v882 = vpack.c.b16 %v656, %v654
      %v883 = vpack.c.b16 %v657, %v655
      %v884 = vpack.c.b16 %v660, %v658
      %v885 = vpack.c.b16 %v661, %v659
      %v886 = vpack.c.b16 %v664, %v662
      %v887 = vpack.c.b16 %v665, %v663
      %v888 = vpack.c.b16 %v668, %v666
      %v889 = vpack.c.b16 %v669, %v667
      %v890 = vpack.c.b16 %v672, %v670
      %v891 = vpack.c.b16 %v673, %v671
      %v892 = vpack.c.b16 %v676, %v674
      %v893 = vpack.c.b16 %v677, %v675
      %v894 = vpack.c.b16 %v680, %v678
      %v895 = vpack.c.b16 %v681, %v679
      %v896 = vpack.c.b16 %v684, %v682
      %v897 = vpack.c.b16 %v685, %v683
      %v898 = vpack.c.b16 %v688, %v686
      %v899 = vpack.c.b16 %v689, %v687
      %v900 = vpack.c.b16 %v692, %v690
      %v901 = vpack.c.b16 %v693, %v691
      %v902 = vpack.c.b16 %v696, %v694
      %v903 = vpack.c.b16 %v697, %v695
      %v904 = vpack.c.b16 %v700, %v698
      %v905 = vpack.c.b16 %v701, %v699
      %v906 = vpack.c.b16 %v704, %v702
      %v907 = vpack.c.b16 %v705, %v703
      %v908 = vpack.c.b16 %v708, %v706
      %v909 = vpack.c.b16 %v709, %v707
      %v910 = vpack.c.b16 %v712, %v710
      %v911 = vpack.c.b16 %v713, %v711
      %v912 = vpack.c.b16 %v716, %v714
      %v913 = vpack.c.b16 %v717, %v715
      %v914 = vpack.c.b16 %v720, %v718
      %v915 = vpack.c.b16 %v721, %v719
      %v916 = vpack.c.b16 %v724, %v722
      %v917 = vpack.c.b16 %v725, %v723
      %v918 = vpack.c.b16 %v728, %v726
      %v919 = vpack.c.b16 %v729, %v727
      %v920 = vpack.c.b16 %v732, %v730
      %v921 = vpack.c.b16 %v733, %v731
      %v922 = vpack.c.b16 %v736, %v734
      %v923 = vpack.c.b16 %v737, %v735
      %v924 = vpack.c.b16 %v740, %v738
      %v925 = vpack.c.b16 %v741, %v739
      %v926 = vpack.c.b16 %v744, %v742
      %v927 = vpack.c.b16 %v745, %v743
      %v928 = vpack.c.b16 %v748, %v746
      %v929 = vpack.c.b16 %v749, %v747
      %v930 = vpack.c.b16 %v752, %v750
      %v931 = vpack.c.b16 %v753, %v751
      %v932 = vpack.c.b16 %v756, %v754
      %v933 = vpack.c.b16 %v757, %v755
      %v934 = vpack.c.b16 %v760, %v758
      %v935 = vpack.c.b16 %v761, %v759
      %v936 = vpack.c.b16 %v764, %v762
      %v937 = vpack.c.b16 %v765, %v763
      %v938 = vpack.c.b16 %v768, %v766
      %v939 = vpack.c.b16 %v769, %v767
      %v940 = vpack.c.b16 %v772, %v770
      %v941 = vpack.c.b16 %v773, %v771
      %v942 = vpack.c.b16 %v776, %v774
      %v943 = vpack.c.b16 %v777, %v775
      %v944 = vpack.c.b16 %v780, %v778
      %v945 = vpack.c.b16 %v781, %v779
      %v946 = vpack.c.b16 %v784, %v782
      %v947 = vpack.c.b16 %v785, %v783
      %v948 = vpack.c.b16 %v788, %v786
      %v949 = vpack.c.b16 %v789, %v787
      %v950 = vpack.c.b16 %v792, %v790
      %v951 = vpack.c.b16 %v793, %v791
      %v952 = vpack.c.b16 %v796, %v794
      %v953 = vpack.c.b16 %v797, %v795
      %v954 = vpack.c.b16 %v800, %v798
      %v955 = vpack.c.b16 %v801, %v799
      %v956 = vpack.c.b16 %v804, %v802
      %v957 = vpack.c.b16 %v805, %v803
      %v958 = vpack.c.b16 %v808, %v806
      %v959 = vpack.c.b16 %v809, %v807
      %v960 = vpack.c.b16 %v812, %v810
      %v961 = vpack.c.b16 %v813, %v811
      %v962 = vpack.c.b16 %v816, %v814
      %v963 = vpack.c.b16 %v817, %v815
      %v964 = vpack.c.b16 %v820, %v818
      %v965 = vpack.c.b16 %v821, %v819
      %v966 = vpack.c.b16 %v824, %v822
      %v967 = vpack.c.b16 %v825, %v823
      %v968 = vpack.c.b16 %v828, %v826
      %v969 = vpack.c.b16 %v829, %v827
      %v970 = vpack.c.b16 %v832, %v830
      %v971 = vpack.c.b16 %v833, %v831
      %v972 = vpack.c.b16 %v836, %v834
      %v973 = vpack.c.b16 %v837, %v835
      %v974 = vpack.c.b16 %v840, %v838
      %v975 = vpack.c.b16 %v841, %v839
      %v976 = vpack.c.b16 %v844, %v842
      %v977 = vpack.c.b16 %v845, %v843
      %v978 = vpack.c.b16 %v848, %v846
      %v979 = vpack.c.b16 %v849, %v847
      %v980 = vpack.c.b16 %v852, %v850
      %v981 = vpack.c.b16 %v853, %v851
      %v1142 = vunpack.c.l.b16 %v438
      %v1143 = vunpack.c.l.b16 %v439
      %v1144 = vunpack.c.l.b16 %v440
      %v1145 = vunpack.c.l.b16 %v441
      %v1146 = vunpack.c.l.b16 %v442
      %v1147 = vunpack.c.l.b16 %v443
      %v1148 = vunpack.c.l.b16 %v444
      %v1149 = vunpack.c.l.b16 %v445
      %v1150 = vunpack.c.l.b16 %v446
      %v1151 = vunpack.c.l.b16 %v447
      %v1152 = vunpack.c.l.b16 %v448
      %v1153 = vunpack.c.l.b16 %v449
      %v1154 = vunpack.c.l.b16 %v450
      %v1155 = vunpack.c.l.b16 %v451
      %v1156 = vunpack.c.l.b16 %v452
      %v1157 = vunpack.c.l.b16 %v453
      %v1158 = vunpack.c.l.b16 %v454
      %v1159 = vunpack.c.l.b16 %v455
      %v1160 = vunpack.c.l.b16 %v456
      %v1161 = vunpack.c.l.b16 %v457
      %v1162 = vunpack.c.l.b16 %v458
      %v1163 = vunpack.c.l.b16 %v459
      %v1164 = vunpack.c.l.b16 %v460
      %v1165 = vunpack.c.l.b16 %v461
      %v1166 = vunpack.c.l.b16 %v462
      %v1167 = vunpack.c.l.b16 %v463
      %v1168 = vunpack.c.l.b16 %v464
      %v1169 = vunpack.c.l.b16 %v465
      %v1170 = vunpack.c.l.b16 %v466
      %v1171 = vunpack.c.l.b16 %v467
      %v1172 = vunpack.c.l.b16 %v468
      %v1173 = vunpack.c.l.b16 %v469
      %v1174 = vpack.c.b16 %v1143, %v1142
      %v1175 = vpack.c.b16 %v1145, %v1144
      %v1176 = vpack.c.b16 %v1147, %v1146
      %v1177 = vpack.c.b16 %v1149, %v1148
      %v1178 = vpack.c.b16 %v1151, %v1150
      %v1179 = vpack.c.b16 %v1153, %v1152
      %v1180 = vpack.c.b16 %v1155, %v1154
      %v1181 = vpack.c.b16 %v1157, %v1156
      %v1182 = vpack.c.b16 %v1159, %v1158
      %v1183 = vpack.c.b16 %v1161, %v1160
      %v1184 = vpack.c.b16 %v1163, %v1162
      %v1185 = vpack.c.b16 %v1165, %v1164
      %v1186 = vpack.c.b16 %v1167, %v1166
      %v1187 = vpack.c.b16 %v1169, %v1168
      %v1188 = vpack.c.b16 %v1171, %v1170
      %v1189 = vpack.c.b16 %v1173, %v1172
      %1206 = vmatprep.subr.bf16.mxu0 0
      %1207 = vmatpush1.bf16.msra.mxu0 %v1174
      %1208 = vmatprep.subr.bf16.mxu0 0
      %1209 = vmatpush1.bf16.msra.mxu0 %v1175
      %1210 = vmatprep.subr.bf16.mxu0 0
      %1211 = vmatpush1.bf16.msra.mxu0 %v1176
      %1212 = vmatprep.subr.bf16.mxu0 0
      %1213 = vmatpush1.bf16.msra.mxu0 %v1177
      %1214 = vmatprep.subr.bf16.mxu0 0
      %1215 = vmatpush1.bf16.msra.mxu0 %v1178
      %1216 = vmatprep.subr.bf16.mxu0 0
      %1217 = vmatpush1.bf16.msra.mxu0 %v1179
      %1218 = vmatprep.subr.bf16.mxu0 0
      %1219 = vmatpush1.bf16.msra.mxu0 %v1180
      %1220 = vmatprep.subr.bf16.mxu0 0
      %1221 = vmatpush1.bf16.msra.mxu0 %v1181
      %1222 = vmatprep.subr.bf16.mxu0 0
      %1223 = vmatpush1.bf16.msra.mxu0 %v1182
      %1224 = vmatprep.subr.bf16.mxu0 0
      %1225 = vmatpush1.bf16.msra.mxu0 %v1183
      %1226 = vmatprep.subr.bf16.mxu0 0
      %1227 = vmatpush1.bf16.msra.mxu0 %v1184
      %1228 = vmatprep.subr.bf16.mxu0 0
      %1229 = vmatpush1.bf16.msra.mxu0 %v1185
      %1230 = vmatprep.subr.bf16.mxu0 0
      %1231 = vmatpush1.bf16.msra.mxu0 %v1186
      %1232 = vmatprep.subr.bf16.mxu0 0
      %1233 = vmatpush1.bf16.msra.mxu0 %v1187
      %1234 = vmatprep.subr.bf16.mxu0 0
      %1235 = vmatpush1.bf16.msra.mxu0 %v1188
      %1236 = vmatprep.subr.bf16.mxu0 0
      %1237 = vmatpush1.bf16.msra.mxu0 %v1189
      %1238 = vmatprep.mubr.bf16.mxu0 %v855
      %1239 = vmatmul.mubr.bf16.gmra.mrb[0].mxu0 %v854
      %v1240 = vpop.f32.mrb[0].mxu0
      %v1241 = vadd.f32 0.0, %v1240
      %v1242 = vpop.f32.mrb[0].mxu0
      %v1243 = vpop.f32.mrb[0].mxu0
      %v1244 = vadd.f32 0.0, %v1243
      %v1245 = vpop.f32.mrb[0].mxu0
      %1246 = vmatprep.mubr.bf16.mxu0 %v857
      %1247 = vmatmul.mubr.bf16.gmra.mrb[0].mxu0 %v856
      %v1248 = vpop.f32.mrb[0].mxu0
      %v1249 = vadd.f32 0.0, %v1248
      %v1250 = vpop.f32.mrb[0].mxu0
      %v1251 = vpop.f32.mrb[0].mxu0
      %v1252 = vadd.f32 0.0, %v1251
      %v1253 = vpop.f32.mrb[0].mxu0
      %1254 = vmatprep.mubr.bf16.mxu0 %v859
      %1255 = vmatmul.mubr.bf16.gmra.mrb[0].mxu0 %v858
      %v1256 = vpop.f32.mrb[0].mxu0
      %v1257 = vadd.f32 0.0, %v1256
      %v1258 = vpop.f32.mrb[0].mxu0
      %v1259 = vpop.f32.mrb[0].mxu0
      %v1260 = vadd.f32 0.0, %v1259
      %v1261 = vpop.f32.mrb[0].mxu0
      %1262 = vmatprep.mubr.bf16.mxu0 %v861
      %1263 = vmatmul.mubr.bf16.gmra.mrb[0].mxu0 %v860
      %v1264 = vpop.f32.mrb[0].mxu0
      %v1265 = vadd.f32 0.0, %v1264
      %v1266 = vpop.f32.mrb[0].mxu0
      %v1267 = vpop.f32.mrb[0].mxu0
      %v1268 = vadd.f32 0.0, %v1267
      %v1269 = vpop.f32.mrb[0].mxu0
      %1270 = vmatprep.mubr.bf16.mxu0 %v863
      %1271 = vmatmul.mubr.bf16.gmra.mrb[0].mxu0 %v862
      %v1272 = vpop.f32.mrb[0].mxu0
      %v1273 = vadd.f32 0.0, %v1272
      %v1274 = vpop.f32.mrb[0].mxu0
      %v1275 = vpop.f32.mrb[0].mxu0
      %v1276 = vadd.f32 0.0, %v1275
      %v1277 = vpop.f32.mrb[0].mxu0
      %1278 = vmatprep.mubr.bf16.mxu0 %v865
      %1279 = vmatmul.mubr.bf16.gmra.mrb[0].mxu0 %v864
      %v1280 = vpop.f32.mrb[0].mxu0
      %v1281 = vadd.f32 0.0, %v1280
      %v1282 = vpop.f32.mrb[0].mxu0
      %v1283 = vpop.f32.mrb[0].mxu0
      %v1284 = vadd.f32 0.0, %v1283
      %v1285 = vpop.f32.mrb[0].mxu0
      %1286 = vmatprep.mubr.bf16.mxu0 %v867
      %1287 = vmatmul.mubr.bf16.gmra.mrb[0].mxu0 %v866
      %v1288 = vpop.f32.mrb[0].mxu0
      %v1289 = vadd.f32 0.0, %v1288
      %v1290 = vpop.f32.mrb[0].mxu0
      %v1291 = vpop.f32.mrb[0].mxu0
      %v1292 = vadd.f32 0.0, %v1291
      %v1293 = vpop.f32.mrb[0].mxu0
      %1294 = vmatprep.mubr.bf16.mxu0 %v869
      %1295 = vmatmul.mubr.bf16.gmra.mrb[0].mxu0 %v868
      %v1296 = vpop.f32.mrb[0].mxu0
      %v1297 = vadd.f32 0.0, %v1296
      %v1298 = vpop.f32.mrb[0].mxu0
      %v1299 = vpop.f32.mrb[0].mxu0
      %v1300 = vadd.f32 0.0, %v1299
      %v1301 = vpop.f32.mrb[0].mxu0
      %1302 = vmatprep.mubr.bf16.mxu0 %v871
      %1303 = vmatmul.mubr.bf16.gmra.mrb[0].mxu0 %v870
      %v1304 = vpop.f32.mrb[0].mxu0
      %v1305 = vadd.f32 0.0, %v1304
      %v1306 = vpop.f32.mrb[0].mxu0
      %v1307 = vpop.f32.mrb[0].mxu0
      %v1308 = vadd.f32 0.0, %v1307
      %v1309 = vpop.f32.mrb[0].mxu0
      %1310 = vmatprep.mubr.bf16.mxu0 %v873
      %1311 = vmatmul.mubr.bf16.gmra.mrb[0].mxu0 %v872
      %v1312 = vpop.f32.mrb[0].mxu0
      %v1313 = vadd.f32 0.0, %v1312
      %v1314 = vpop.f32.mrb[0].mxu0
      %v1315 = vpop.f32.mrb[0].mxu0
      %v1316 = vadd.f32 0.0, %v1315
      %v1317 = vpop.f32.mrb[0].mxu0
      %1318 = vmatprep.mubr.bf16.mxu0 %v875
      %1319 = vmatmul.mubr.bf16.gmra.mrb[0].mxu0 %v874
      %v1320 = vpop.f32.mrb[0].mxu0
      %v1321 = vadd.f32 0.0, %v1320
      %v1322 = vpop.f32.mrb[0].mxu0
      %v1323 = vpop.f32.mrb[0].mxu0
      %v1324 = vadd.f32 0.0, %v1323
      %v1325 = vpop.f32.mrb[0].mxu0
      %1326 = vmatprep.mubr.bf16.mxu0 %v877
      %1327 = vmatmul.mubr.bf16.gmra.mrb[0].mxu0 %v876
      %v1328 = vpop.f32.mrb[0].mxu0
      %v1329 = vadd.f32 0.0, %v1328
      %v1330 = vpop.f32.mrb[0].mxu0
      %v1331 = vpop.f32.mrb[0].mxu0
      %v1332 = vadd.f32 0.0, %v1331
      %v1333 = vpop.f32.mrb[0].mxu0
      %1334 = vmatprep.mubr.bf16.mxu0 %v879
      %1335 = vmatmul.mubr.bf16.gmra.mrb[0].mxu0 %v878
      %v1336 = vpop.f32.mrb[0].mxu0
      %v1337 = vadd.f32 0.0, %v1336
      %v1338 = vpop.f32.mrb[0].mxu0
      %v1339 = vpop.f32.mrb[0].mxu0
      %v1340 = vadd.f32 0.0, %v1339
      %v1341 = vpop.f32.mrb[0].mxu0
      %1342 = vmatprep.mubr.bf16.mxu0 %v881
      %1343 = vmatmul.mubr.bf16.gmra.mrb[0].mxu0 %v880
      %v1344 = vpop.f32.mrb[0].mxu0
      %v1345 = vadd.f32 0.0, %v1344
      %v1346 = vpop.f32.mrb[0].mxu0
      %v1347 = vpop.f32.mrb[0].mxu0
      %v1348 = vadd.f32 0.0, %v1347
      %v1349 = vpop.f32.mrb[0].mxu0
      %1350 = vmatprep.mubr.bf16.mxu0 %v883
      %1351 = vmatmul.mubr.bf16.gmra.mrb[0].mxu0 %v882
      %v1352 = vpop.f32.mrb[0].mxu0
      %v1353 = vadd.f32 0.0, %v1352
      %v1354 = vpop.f32.mrb[0].mxu0
      %v1355 = vpop.f32.mrb[0].mxu0
      %v1356 = vadd.f32 0.0, %v1355
      %v1357 = vpop.f32.mrb[0].mxu0
      %1358 = vmatprep.mubr.bf16.mxu0 %v885
      %1359 = vmatmul.mubr.bf16.gmra.mrb[0].mxu0 %v884
      %v1360 = vpop.f32.mrb[0].mxu0
      %v1361 = vadd.f32 0.0, %v1360
      %v1362 = vpop.f32.mrb[0].mxu0
      %v1363 = vpop.f32.mrb[0].mxu0
      %v1364 = vadd.f32 0.0, %v1363
      %v1365 = vpop.f32.mrb[0].mxu0
      %1366 = vmatprep.mubr.bf16.mxu0 %v887
      %1367 = vmatmul.mubr.bf16.gmra.mrb[0].mxu0 %v886
      %v1368 = vpop.f32.mrb[0].mxu0
      %v1369 = vadd.f32 0.0, %v1368
      %v1370 = vpop.f32.mrb[0].mxu0
      %v1371 = vpop.f32.mrb[0].mxu0
      %v1372 = vadd.f32 0.0, %v1371
      %v1373 = vpop.f32.mrb[0].mxu0
      %1374 = vmatprep.mubr.bf16.mxu0 %v889
      %1375 = vmatmul.mubr.bf16.gmra.mrb[0].mxu0 %v888
      %v1376 = vpop.f32.mrb[0].mxu0
      %v1377 = vadd.f32 0.0, %v1376
      %v1378 = vpop.f32.mrb[0].mxu0
      %v1379 = vpop.f32.mrb[0].mxu0
      %v1380 = vadd.f32 0.0, %v1379
      %v1381 = vpop.f32.mrb[0].mxu0
      %1382 = vmatprep.mubr.bf16.mxu0 %v891
      %1383 = vmatmul.mubr.bf16.gmra.mrb[0].mxu0 %v890
      %v1384 = vpop.f32.mrb[0].mxu0
      %v1385 = vadd.f32 0.0, %v1384
      %v1386 = vpop.f32.mrb[0].mxu0
      %v1387 = vpop.f32.mrb[0].mxu0
      %v1388 = vadd.f32 0.0, %v1387
      %v1389 = vpop.f32.mrb[0].mxu0
      %1390 = vmatprep.mubr.bf16.mxu0 %v893
      %1391 = vmatmul.mubr.bf16.gmra.mrb[0].mxu0 %v892
      %v1392 = vpop.f32.mrb[0].mxu0
      %v1393 = vadd.f32 0.0, %v1392
      %v1394 = vpop.f32.mrb[0].mxu0
      %v1395 = vpop.f32.mrb[0].mxu0
      %v1396 = vadd.f32 0.0, %v1395
      %v1397 = vpop.f32.mrb[0].mxu0
      %1398 = vmatprep.mubr.bf16.mxu0 %v895
      %1399 = vmatmul.mubr.bf16.gmra.mrb[0].mxu0 %v894
      %v1400 = vpop.f32.mrb[0].mxu0
      %v1401 = vadd.f32 0.0, %v1400
      %v1402 = vpop.f32.mrb[0].mxu0
      %v1403 = vpop.f32.mrb[0].mxu0
      %v1404 = vadd.f32 0.0, %v1403
      %v1405 = vpop.f32.mrb[0].mxu0
      %1406 = vmatprep.mubr.bf16.mxu0 %v897
      %1407 = vmatmul.mubr.bf16.gmra.mrb[0].mxu0 %v896
      %v1408 = vpop.f32.mrb[0].mxu0
      %v1409 = vadd.f32 0.0, %v1408
      %v1410 = vpop.f32.mrb[0].mxu0
      %v1411 = vpop.f32.mrb[0].mxu0
      %v1412 = vadd.f32 0.0, %v1411
      %v1413 = vpop.f32.mrb[0].mxu0
      %1414 = vmatprep.mubr.bf16.mxu0 %v899
      %1415 = vmatmul.mubr.bf16.gmra.mrb[0].mxu0 %v898
      %v1416 = vpop.f32.mrb[0].mxu0
      %v1417 = vadd.f32 0.0, %v1416
      %v1418 = vpop.f32.mrb[0].mxu0
      %v1419 = vpop.f32.mrb[0].mxu0
      %v1420 = vadd.f32 0.0, %v1419
      %v1421 = vpop.f32.mrb[0].mxu0
      %1422 = vmatprep.mubr.bf16.mxu0 %v901
      %1423 = vmatmul.mubr.bf16.gmra.mrb[0].mxu0 %v900
      %v1424 = vpop.f32.mrb[0].mxu0
      %v1425 = vadd.f32 0.0, %v1424
      %v1426 = vpop.f32.mrb[0].mxu0
      %v1427 = vpop.f32.mrb[0].mxu0
      %v1428 = vadd.f32 0.0, %v1427
      %v1429 = vpop.f32.mrb[0].mxu0
      %1430 = vmatprep.mubr.bf16.mxu0 %v903
      %1431 = vmatmul.mubr.bf16.gmra.mrb[0].mxu0 %v902
      %v1432 = vpop.f32.mrb[0].mxu0
      %v1433 = vadd.f32 0.0, %v1432
      %v1434 = vpop.f32.mrb[0].mxu0
      %v1435 = vpop.f32.mrb[0].mxu0
      %v1436 = vadd.f32 0.0, %v1435
      %v1437 = vpop.f32.mrb[0].mxu0
      %1438 = vmatprep.mubr.bf16.mxu0 %v905
      %1439 = vmatmul.mubr.bf16.gmra.mrb[0].mxu0 %v904
      %v1440 = vpop.f32.mrb[0].mxu0
      %v1441 = vadd.f32 0.0, %v1440
      %v1442 = vpop.f32.mrb[0].mxu0
      %v1443 = vpop.f32.mrb[0].mxu0
      %v1444 = vadd.f32 0.0, %v1443
      %v1445 = vpop.f32.mrb[0].mxu0
      %1446 = vmatprep.mubr.bf16.mxu0 %v907
      %1447 = vmatmul.mubr.bf16.gmra.mrb[0].mxu0 %v906
      %v1448 = vpop.f32.mrb[0].mxu0
      %v1449 = vadd.f32 0.0, %v1448
      %v1450 = vpop.f32.mrb[0].mxu0
      %v1451 = vpop.f32.mrb[0].mxu0
      %v1452 = vadd.f32 0.0, %v1451
      %v1453 = vpop.f32.mrb[0].mxu0
      %1454 = vmatprep.mubr.bf16.mxu0 %v909
      %1455 = vmatmul.mubr.bf16.gmra.mrb[0].mxu0 %v908
      %v1456 = vpop.f32.mrb[0].mxu0
      %v1457 = vadd.f32 0.0, %v1456
      %v1458 = vpop.f32.mrb[0].mxu0
      %v1459 = vpop.f32.mrb[0].mxu0
      %v1460 = vadd.f32 0.0, %v1459
      %v1461 = vpop.f32.mrb[0].mxu0
      %1462 = vmatprep.mubr.bf16.mxu0 %v911
      %1463 = vmatmul.mubr.bf16.gmra.mrb[0].mxu0 %v910
      %v1464 = vpop.f32.mrb[0].mxu0
      %v1465 = vadd.f32 0.0, %v1464
      %v1466 = vpop.f32.mrb[0].mxu0
      %v1467 = vpop.f32.mrb[0].mxu0
      %v1468 = vadd.f32 0.0, %v1467
      %v1469 = vpop.f32.mrb[0].mxu0
      %1470 = vmatprep.mubr.bf16.mxu0 %v913
      %1471 = vmatmul.mubr.bf16.gmra.mrb[0].mxu0 %v912
      %v1472 = vpop.f32.mrb[0].mxu0
      %v1473 = vadd.f32 0.0, %v1472
      %v1474 = vpop.f32.mrb[0].mxu0
      %v1475 = vpop.f32.mrb[0].mxu0
      %v1476 = vadd.f32 0.0, %v1475
      %v1477 = vpop.f32.mrb[0].mxu0
      %1478 = vmatprep.mubr.bf16.mxu0 %v915
      %1479 = vmatmul.mubr.bf16.gmra.mrb[0].mxu0 %v914
      %v1480 = vpop.f32.mrb[0].mxu0
      %v1481 = vadd.f32 0.0, %v1480
      %v1482 = vpop.f32.mrb[0].mxu0
      %v1483 = vpop.f32.mrb[0].mxu0
      %v1484 = vadd.f32 0.0, %v1483
      %v1485 = vpop.f32.mrb[0].mxu0
      %1486 = vmatprep.mubr.bf16.mxu0 %v917
      %1487 = vmatmul.mubr.bf16.gmra.mrb[0].mxu0 %v916
      %v1488 = vpop.f32.mrb[0].mxu0
      %v1489 = vadd.f32 0.0, %v1488
      %v1490 = vpop.f32.mrb[0].mxu0
      %v1491 = vpop.f32.mrb[0].mxu0
      %v1492 = vadd.f32 0.0, %v1491
      %v1493 = vpop.f32.mrb[0].mxu0
      %1494 = vmatprep.mubr.bf16.mxu0 %v919
      %1495 = vmatmul.mubr.bf16.gmra.mrb[0].mxu0 %v918
      %v1496 = vpop.f32.mrb[0].mxu0
      %v1497 = vadd.f32 0.0, %v1496
      %v1498 = vpop.f32.mrb[0].mxu0
      %v1499 = vpop.f32.mrb[0].mxu0
      %v1500 = vadd.f32 0.0, %v1499
      %v1501 = vpop.f32.mrb[0].mxu0
      %1502 = vmatprep.mubr.bf16.mxu0 %v921
      %1503 = vmatmul.mubr.bf16.gmra.mrb[0].mxu0 %v920
      %v1504 = vpop.f32.mrb[0].mxu0
      %v1505 = vadd.f32 0.0, %v1504
      %v1506 = vpop.f32.mrb[0].mxu0
      %v1507 = vpop.f32.mrb[0].mxu0
      %v1508 = vadd.f32 0.0, %v1507
      %v1509 = vpop.f32.mrb[0].mxu0
      %1510 = vmatprep.mubr.bf16.mxu0 %v923
      %1511 = vmatmul.mubr.bf16.gmra.mrb[0].mxu0 %v922
      %v1512 = vpop.f32.mrb[0].mxu0
      %v1513 = vadd.f32 0.0, %v1512
      %v1514 = vpop.f32.mrb[0].mxu0
      %v1515 = vpop.f32.mrb[0].mxu0
      %v1516 = vadd.f32 0.0, %v1515
      %v1517 = vpop.f32.mrb[0].mxu0
      %1518 = vmatprep.mubr.bf16.mxu0 %v925
      %1519 = vmatmul.mubr.bf16.gmra.mrb[0].mxu0 %v924
      %v1520 = vpop.f32.mrb[0].mxu0
      %v1521 = vadd.f32 0.0, %v1520
      %v1522 = vpop.f32.mrb[0].mxu0
      %v1523 = vpop.f32.mrb[0].mxu0
      %v1524 = vadd.f32 0.0, %v1523
      %v1525 = vpop.f32.mrb[0].mxu0
      %1526 = vmatprep.mubr.bf16.mxu0 %v927
      %1527 = vmatmul.mubr.bf16.gmra.mrb[0].mxu0 %v926
      %v1528 = vpop.f32.mrb[0].mxu0
      %v1529 = vadd.f32 0.0, %v1528
      %v1530 = vpop.f32.mrb[0].mxu0
      %v1531 = vpop.f32.mrb[0].mxu0
      %v1532 = vadd.f32 0.0, %v1531
      %v1533 = vpop.f32.mrb[0].mxu0
      %1534 = vmatprep.mubr.bf16.mxu0 %v929
      %1535 = vmatmul.mubr.bf16.gmra.mrb[0].mxu0 %v928
      %v1536 = vpop.f32.mrb[0].mxu0
      %v1537 = vadd.f32 0.0, %v1536
      %v1538 = vpop.f32.mrb[0].mxu0
      %v1539 = vpop.f32.mrb[0].mxu0
      %v1540 = vadd.f32 0.0, %v1539
      %v1541 = vpop.f32.mrb[0].mxu0
      %1542 = vmatprep.mubr.bf16.mxu0 %v931
      %1543 = vmatmul.mubr.bf16.gmra.mrb[0].mxu0 %v930
      %v1544 = vpop.f32.mrb[0].mxu0
      %v1545 = vadd.f32 0.0, %v1544
      %v1546 = vpop.f32.mrb[0].mxu0
      %v1547 = vpop.f32.mrb[0].mxu0
      %v1548 = vadd.f32 0.0, %v1547
      %v1549 = vpop.f32.mrb[0].mxu0
      %1550 = vmatprep.mubr.bf16.mxu0 %v933
      %1551 = vmatmul.mubr.bf16.gmra.mrb[0].mxu0 %v932
      %v1552 = vpop.f32.mrb[0].mxu0
      %v1553 = vadd.f32 0.0, %v1552
      %v1554 = vpop.f32.mrb[0].mxu0
      %v1555 = vpop.f32.mrb[0].mxu0
      %v1556 = vadd.f32 0.0, %v1555
      %v1557 = vpop.f32.mrb[0].mxu0
      %1558 = vmatprep.mubr.bf16.mxu0 %v935
      %1559 = vmatmul.mubr.bf16.gmra.mrb[0].mxu0 %v934
      %v1560 = vpop.f32.mrb[0].mxu0
      %v1561 = vadd.f32 0.0, %v1560
      %v1562 = vpop.f32.mrb[0].mxu0
      %v1563 = vpop.f32.mrb[0].mxu0
      %v1564 = vadd.f32 0.0, %v1563
      %v1565 = vpop.f32.mrb[0].mxu0
      %1566 = vmatprep.mubr.bf16.mxu0 %v937
      %1567 = vmatmul.mubr.bf16.gmra.mrb[0].mxu0 %v936
      %v1568 = vpop.f32.mrb[0].mxu0
      %v1569 = vadd.f32 0.0, %v1568
      %v1570 = vpop.f32.mrb[0].mxu0
      %v1571 = vpop.f32.mrb[0].mxu0
      %v1572 = vadd.f32 0.0, %v1571
      %v1573 = vpop.f32.mrb[0].mxu0
      %1574 = vmatprep.mubr.bf16.mxu0 %v939
      %1575 = vmatmul.mubr.bf16.gmra.mrb[0].mxu0 %v938
      %v1576 = vpop.f32.mrb[0].mxu0
      %v1577 = vadd.f32 0.0, %v1576
      %v1578 = vpop.f32.mrb[0].mxu0
      %v1579 = vpop.f32.mrb[0].mxu0
      %v1580 = vadd.f32 0.0, %v1579
      %v1581 = vpop.f32.mrb[0].mxu0
      %1582 = vmatprep.mubr.bf16.mxu0 %v941
      %1583 = vmatmul.mubr.bf16.gmra.mrb[0].mxu0 %v940
      %v1584 = vpop.f32.mrb[0].mxu0
      %v1585 = vadd.f32 0.0, %v1584
      %v1586 = vpop.f32.mrb[0].mxu0
      %v1587 = vpop.f32.mrb[0].mxu0
      %v1588 = vadd.f32 0.0, %v1587
      %v1589 = vpop.f32.mrb[0].mxu0
      %1590 = vmatprep.mubr.bf16.mxu0 %v943
      %1591 = vmatmul.mubr.bf16.gmra.mrb[0].mxu0 %v942
      %v1592 = vpop.f32.mrb[0].mxu0
      %v1593 = vadd.f32 0.0, %v1592
      %v1594 = vpop.f32.mrb[0].mxu0
      %v1595 = vpop.f32.mrb[0].mxu0
      %v1596 = vadd.f32 0.0, %v1595
      %v1597 = vpop.f32.mrb[0].mxu0
      %1598 = vmatprep.mubr.bf16.mxu0 %v945
      %1599 = vmatmul.mubr.bf16.gmra.mrb[0].mxu0 %v944
      %v1600 = vpop.f32.mrb[0].mxu0
      %v1601 = vadd.f32 0.0, %v1600
      %v1602 = vpop.f32.mrb[0].mxu0
      %v1603 = vpop.f32.mrb[0].mxu0
      %v1604 = vadd.f32 0.0, %v1603
      %v1605 = vpop.f32.mrb[0].mxu0
      %1606 = vmatprep.mubr.bf16.mxu0 %v947
      %1607 = vmatmul.mubr.bf16.gmra.mrb[0].mxu0 %v946
      %v1608 = vpop.f32.mrb[0].mxu0
      %v1609 = vadd.f32 0.0, %v1608
      %v1610 = vpop.f32.mrb[0].mxu0
      %v1611 = vpop.f32.mrb[0].mxu0
      %v1612 = vadd.f32 0.0, %v1611
      %v1613 = vpop.f32.mrb[0].mxu0
      %1614 = vmatprep.mubr.bf16.mxu0 %v949
      %1615 = vmatmul.mubr.bf16.gmra.mrb[0].mxu0 %v948
      %v1616 = vpop.f32.mrb[0].mxu0
      %v1617 = vadd.f32 0.0, %v1616
      %v1618 = vpop.f32.mrb[0].mxu0
      %v1619 = vpop.f32.mrb[0].mxu0
      %v1620 = vadd.f32 0.0, %v1619
      %v1621 = vpop.f32.mrb[0].mxu0
      %1622 = vmatprep.mubr.bf16.mxu0 %v951
      %1623 = vmatmul.mubr.bf16.gmra.mrb[0].mxu0 %v950
      %v1624 = vpop.f32.mrb[0].mxu0
      %v1625 = vadd.f32 0.0, %v1624
      %v1626 = vpop.f32.mrb[0].mxu0
      %v1627 = vpop.f32.mrb[0].mxu0
      %v1628 = vadd.f32 0.0, %v1627
      %v1629 = vpop.f32.mrb[0].mxu0
      %1630 = vmatprep.mubr.bf16.mxu0 %v953
      %1631 = vmatmul.mubr.bf16.gmra.mrb[0].mxu0 %v952
      %v1632 = vpop.f32.mrb[0].mxu0
      %v1633 = vadd.f32 0.0, %v1632
      %v1634 = vpop.f32.mrb[0].mxu0
      %v1635 = vpop.f32.mrb[0].mxu0
      %v1636 = vadd.f32 0.0, %v1635
      %v1637 = vpop.f32.mrb[0].mxu0
      %1638 = vmatprep.mubr.bf16.mxu0 %v955
      %1639 = vmatmul.mubr.bf16.gmra.mrb[0].mxu0 %v954
      %v1640 = vpop.f32.mrb[0].mxu0
      %v1641 = vadd.f32 0.0, %v1640
      %v1642 = vpop.f32.mrb[0].mxu0
      %v1643 = vpop.f32.mrb[0].mxu0
      %v1644 = vadd.f32 0.0, %v1643
      %v1645 = vpop.f32.mrb[0].mxu0
      %1646 = vmatprep.mubr.bf16.mxu0 %v957
      %1647 = vmatmul.mubr.bf16.gmra.mrb[0].mxu0 %v956
      %v1648 = vpop.f32.mrb[0].mxu0
      %v1649 = vadd.f32 0.0, %v1648
      %v1650 = vpop.f32.mrb[0].mxu0
      %v1651 = vpop.f32.mrb[0].mxu0
      %v1652 = vadd.f32 0.0, %v1651
      %v1653 = vpop.f32.mrb[0].mxu0
      %1654 = vmatprep.mubr.bf16.mxu0 %v959
      %1655 = vmatmul.mubr.bf16.gmra.mrb[0].mxu0 %v958
      %v1656 = vpop.f32.mrb[0].mxu0
      %v1657 = vadd.f32 0.0, %v1656
      %v1658 = vpop.f32.mrb[0].mxu0
      %v1659 = vpop.f32.mrb[0].mxu0
      %v1660 = vadd.f32 0.0, %v1659
      %v1661 = vpop.f32.mrb[0].mxu0
      %1662 = vmatprep.mubr.bf16.mxu0 %v961
      %1663 = vmatmul.mubr.bf16.gmra.mrb[0].mxu0 %v960
      %v1664 = vpop.f32.mrb[0].mxu0
      %v1665 = vadd.f32 0.0, %v1664
      %v1666 = vpop.f32.mrb[0].mxu0
      %v1667 = vpop.f32.mrb[0].mxu0
      %v1668 = vadd.f32 0.0, %v1667
      %v1669 = vpop.f32.mrb[0].mxu0
      %1670 = vmatprep.mubr.bf16.mxu0 %v963
      %1671 = vmatmul.mubr.bf16.gmra.mrb[0].mxu0 %v962
      %v1672 = vpop.f32.mrb[0].mxu0
      %v1673 = vadd.f32 0.0, %v1672
      %v1674 = vpop.f32.mrb[0].mxu0
      %v1675 = vpop.f32.mrb[0].mxu0
      %v1676 = vadd.f32 0.0, %v1675
      %v1677 = vpop.f32.mrb[0].mxu0
      %1678 = vmatprep.mubr.bf16.mxu0 %v965
      %1679 = vmatmul.mubr.bf16.gmra.mrb[0].mxu0 %v964
      %v1680 = vpop.f32.mrb[0].mxu0
      %v1681 = vadd.f32 0.0, %v1680
      %v1682 = vpop.f32.mrb[0].mxu0
      %v1683 = vpop.f32.mrb[0].mxu0
      %v1684 = vadd.f32 0.0, %v1683
      %v1685 = vpop.f32.mrb[0].mxu0
      %1686 = vmatprep.mubr.bf16.mxu0 %v967
      %1687 = vmatmul.mubr.bf16.gmra.mrb[0].mxu0 %v966
      %v1688 = vpop.f32.mrb[0].mxu0
      %v1689 = vadd.f32 0.0, %v1688
      %v1690 = vpop.f32.mrb[0].mxu0
      %v1691 = vpop.f32.mrb[0].mxu0
      %v1692 = vadd.f32 0.0, %v1691
      %v1693 = vpop.f32.mrb[0].mxu0
      %1694 = vmatprep.mubr.bf16.mxu0 %v969
      %1695 = vmatmul.mubr.bf16.gmra.mrb[0].mxu0 %v968
      %v1696 = vpop.f32.mrb[0].mxu0
      %v1697 = vadd.f32 0.0, %v1696
      %v1698 = vpop.f32.mrb[0].mxu0
      %v1699 = vpop.f32.mrb[0].mxu0
      %v1700 = vadd.f32 0.0, %v1699
      %v1701 = vpop.f32.mrb[0].mxu0
      %1702 = vmatprep.mubr.bf16.mxu0 %v971
      %1703 = vmatmul.mubr.bf16.gmra.mrb[0].mxu0 %v970
      %v1704 = vpop.f32.mrb[0].mxu0
      %v1705 = vadd.f32 0.0, %v1704
      %v1706 = vpop.f32.mrb[0].mxu0
      %v1707 = vpop.f32.mrb[0].mxu0
      %v1708 = vadd.f32 0.0, %v1707
      %v1709 = vpop.f32.mrb[0].mxu0
      %1710 = vmatprep.mubr.bf16.mxu0 %v973
      %1711 = vmatmul.mubr.bf16.gmra.mrb[0].mxu0 %v972
      %v1712 = vpop.f32.mrb[0].mxu0
      %v1713 = vadd.f32 0.0, %v1712
      %v1714 = vpop.f32.mrb[0].mxu0
      %v1715 = vpop.f32.mrb[0].mxu0
      %v1716 = vadd.f32 0.0, %v1715
      %v1717 = vpop.f32.mrb[0].mxu0
      %1718 = vmatprep.mubr.bf16.mxu0 %v975
      %1719 = vmatmul.mubr.bf16.gmra.mrb[0].mxu0 %v974
      %v1720 = vpop.f32.mrb[0].mxu0
      %v1721 = vadd.f32 0.0, %v1720
      %v1722 = vpop.f32.mrb[0].mxu0
      %v1723 = vpop.f32.mrb[0].mxu0
      %v1724 = vadd.f32 0.0, %v1723
      %v1725 = vpop.f32.mrb[0].mxu0
      %1726 = vmatprep.mubr.bf16.mxu0 %v977
      %1727 = vmatmul.mubr.bf16.gmra.mrb[0].mxu0 %v976
      %v1728 = vpop.f32.mrb[0].mxu0
      %v1729 = vadd.f32 0.0, %v1728
      %v1730 = vpop.f32.mrb[0].mxu0
      %v1731 = vpop.f32.mrb[0].mxu0
      %v1732 = vadd.f32 0.0, %v1731
      %v1733 = vpop.f32.mrb[0].mxu0
      %1734 = vmatprep.mubr.bf16.mxu0 %v979
      %1735 = vmatmul.mubr.bf16.gmra.mrb[0].mxu0 %v978
      %v1736 = vpop.f32.mrb[0].mxu0
      %v1737 = vadd.f32 0.0, %v1736
      %v1738 = vpop.f32.mrb[0].mxu0
      %v1739 = vpop.f32.mrb[0].mxu0
      %v1740 = vadd.f32 0.0, %v1739
      %v1741 = vpop.f32.mrb[0].mxu0
      %1742 = vmatprep.mubr.bf16.mxu0 %v981
      %1743 = vmatmul.mubr.bf16.gmra.mrb[0].mxu0 %v980
      %v1744 = vpop.f32.mrb[0].mxu0
      %v1745 = vadd.f32 0.0, %v1744
      %v1746 = vpop.f32.mrb[0].mxu0
      %v1747 = vpop.f32.mrb[0].mxu0
      %v1748 = vadd.f32 0.0, %v1747
      %v1749 = vpop.f32.mrb[0].mxu0
      %1750 = vdwg.mxu0
      %v1751 = vmul.f32 %v1241, %v1241
      %v1752 = vmul.f32 %v1244, %v1244
      %v1753 = vmul.f32 %v1249, %v1249
      %v1754 = vmul.f32 %v1252, %v1252
      %v1755 = vmul.f32 %v1257, %v1257
      %v1756 = vmul.f32 %v1260, %v1260
      %v1757 = vmul.f32 %v1265, %v1265
      %v1758 = vmul.f32 %v1268, %v1268
      %v1759 = vmul.f32 %v1273, %v1273
      %v1760 = vmul.f32 %v1276, %v1276
      %v1761 = vmul.f32 %v1281, %v1281
      %v1762 = vmul.f32 %v1284, %v1284
      %v1763 = vmul.f32 %v1289, %v1289
      %v1764 = vmul.f32 %v1292, %v1292
      %v1765 = vmul.f32 %v1297, %v1297
      %v1766 = vmul.f32 %v1300, %v1300
      %v1767 = vmul.f32 %v1305, %v1305
      %v1768 = vmul.f32 %v1308, %v1308
      %v1769 = vmul.f32 %v1313, %v1313
      %v1770 = vmul.f32 %v1316, %v1316
      %v1771 = vmul.f32 %v1321, %v1321
      %v1772 = vmul.f32 %v1324, %v1324
      %v1773 = vmul.f32 %v1329, %v1329
      %v1774 = vmul.f32 %v1332, %v1332
      %v1775 = vmul.f32 %v1337, %v1337
      %v1776 = vmul.f32 %v1340, %v1340
      %v1777 = vmul.f32 %v1345, %v1345
      %v1778 = vmul.f32 %v1348, %v1348
      %v1779 = vmul.f32 %v1353, %v1353
      %v1780 = vmul.f32 %v1356, %v1356
      %v1781 = vmul.f32 %v1361, %v1361
      %v1782 = vmul.f32 %v1364, %v1364
      %v1783 = vmul.f32 %v1369, %v1369
      %v1784 = vmul.f32 %v1372, %v1372
      %v1785 = vmul.f32 %v1377, %v1377
      %v1786 = vmul.f32 %v1380, %v1380
      %v1787 = vmul.f32 %v1385, %v1385
      %v1788 = vmul.f32 %v1388, %v1388
      %v1789 = vmul.f32 %v1393, %v1393
      %v1790 = vmul.f32 %v1396, %v1396
      %v1791 = vmul.f32 %v1401, %v1401
      %v1792 = vmul.f32 %v1404, %v1404
      %v1793 = vmul.f32 %v1409, %v1409
      %v1794 = vmul.f32 %v1412, %v1412
      %v1795 = vmul.f32 %v1417, %v1417
      %v1796 = vmul.f32 %v1420, %v1420
      %v1797 = vmul.f32 %v1425, %v1425
      %v1798 = vmul.f32 %v1428, %v1428
      %v1799 = vmul.f32 %v1433, %v1433
      %v1800 = vmul.f32 %v1436, %v1436
      %v1801 = vmul.f32 %v1441, %v1441
      %v1802 = vmul.f32 %v1444, %v1444
      %v1803 = vmul.f32 %v1449, %v1449
      %v1804 = vmul.f32 %v1452, %v1452
      %v1805 = vmul.f32 %v1457, %v1457
      %v1806 = vmul.f32 %v1460, %v1460
      %v1807 = vmul.f32 %v1465, %v1465
      %v1808 = vmul.f32 %v1468, %v1468
      %v1809 = vmul.f32 %v1473, %v1473
      %v1810 = vmul.f32 %v1476, %v1476
      %v1811 = vmul.f32 %v1481, %v1481
      %v1812 = vmul.f32 %v1484, %v1484
      %v1813 = vmul.f32 %v1489, %v1489
      %v1814 = vmul.f32 %v1492, %v1492
      %v1815 = vmul.f32 %v1497, %v1497
      %v1816 = vmul.f32 %v1500, %v1500
      %v1817 = vmul.f32 %v1505, %v1505
      %v1818 = vmul.f32 %v1508, %v1508
      %v1819 = vmul.f32 %v1513, %v1513
      %v1820 = vmul.f32 %v1516, %v1516
      %v1821 = vmul.f32 %v1521, %v1521
      %v1822 = vmul.f32 %v1524, %v1524
      %v1823 = vmul.f32 %v1529, %v1529
      %v1824 = vmul.f32 %v1532, %v1532
      %v1825 = vmul.f32 %v1537, %v1537
      %v1826 = vmul.f32 %v1540, %v1540
      %v1827 = vmul.f32 %v1545, %v1545
      %v1828 = vmul.f32 %v1548, %v1548
      %v1829 = vmul.f32 %v1553, %v1553
      %v1830 = vmul.f32 %v1556, %v1556
      %v1831 = vmul.f32 %v1561, %v1561
      %v1832 = vmul.f32 %v1564, %v1564
      %v1833 = vmul.f32 %v1569, %v1569
      %v1834 = vmul.f32 %v1572, %v1572
      %v1835 = vmul.f32 %v1577, %v1577
      %v1836 = vmul.f32 %v1580, %v1580
      %v1837 = vmul.f32 %v1585, %v1585
      %v1838 = vmul.f32 %v1588, %v1588
      %v1839 = vmul.f32 %v1593, %v1593
      %v1840 = vmul.f32 %v1596, %v1596
      %v1841 = vmul.f32 %v1601, %v1601
      %v1842 = vmul.f32 %v1604, %v1604
      %v1843 = vmul.f32 %v1609, %v1609
      %v1844 = vmul.f32 %v1612, %v1612
      %v1845 = vmul.f32 %v1617, %v1617
      %v1846 = vmul.f32 %v1620, %v1620
      %v1847 = vmul.f32 %v1625, %v1625
      %v1848 = vmul.f32 %v1628, %v1628
      %v1849 = vmul.f32 %v1633, %v1633
      %v1850 = vmul.f32 %v1636, %v1636
      %v1851 = vmul.f32 %v1641, %v1641
      %v1852 = vmul.f32 %v1644, %v1644
      %v1853 = vmul.f32 %v1649, %v1649
      %v1854 = vmul.f32 %v1652, %v1652
      %v1855 = vmul.f32 %v1657, %v1657
      %v1856 = vmul.f32 %v1660, %v1660
      %v1857 = vmul.f32 %v1665, %v1665
      %v1858 = vmul.f32 %v1668, %v1668
      %v1859 = vmul.f32 %v1673, %v1673
      %v1860 = vmul.f32 %v1676, %v1676
      %v1861 = vmul.f32 %v1681, %v1681
      %v1862 = vmul.f32 %v1684, %v1684
      %v1863 = vmul.f32 %v1689, %v1689
      %v1864 = vmul.f32 %v1692, %v1692
      %v1865 = vmul.f32 %v1697, %v1697
      %v1866 = vmul.f32 %v1700, %v1700
      %v1867 = vmul.f32 %v1705, %v1705
      %v1868 = vmul.f32 %v1708, %v1708
      %v1869 = vmul.f32 %v1713, %v1713
      %v1870 = vmul.f32 %v1716, %v1716
      %v1871 = vmul.f32 %v1721, %v1721
      %v1872 = vmul.f32 %v1724, %v1724
      %v1873 = vmul.f32 %v1729, %v1729
      %v1874 = vmul.f32 %v1732, %v1732
      %v1875 = vmul.f32 %v1737, %v1737
      %v1876 = vmul.f32 %v1740, %v1740
      %v1877 = vmul.f32 %v1745, %v1745
      %v1878 = vmul.f32 %v1748, %v1748
      %v1879 = vld [vmem:[%s2] sm:$0xff]
      %v1880 = vld [vmem:[%s2 + $0x8] sm:$0xff]
      %v1881 = vld [vmem:[%s2 + $0x10] sm:$0xff]
      %v1882 = vld [vmem:[%s2 + $0x18] sm:$0xff]
      %v1883 = vld [vmem:[%s2 + $0x20] sm:$0xff]
      %v1884 = vld [vmem:[%s2 + $0x28] sm:$0xff]
      %v1885 = vld [vmem:[%s2 + $0x30] sm:$0xff]
      %v1886 = vld [vmem:[%s2 + $0x38] sm:$0xff]
      %v1887 = vld [vmem:[%s2 + $0x40] sm:$0xff]
      %v1888 = vld [vmem:[%s2 + $0x48] sm:$0xff]
      %v1889 = vld [vmem:[%s2 + $0x50] sm:$0xff]
      %v1890 = vld [vmem:[%s2 + $0x58] sm:$0xff]
      %v1891 = vld [vmem:[%s2 + $0x60] sm:$0xff]
      %v1892 = vld [vmem:[%s2 + $0x68] sm:$0xff]
      %v1893 = vld [vmem:[%s2 + $0x70] sm:$0xff]
      %v1894 = vld [vmem:[%s2 + $0x78] sm:$0xff]
      %v1895 = vld [vmem:[%s2 + $0x80] sm:$0xff]
      %v1896 = vld [vmem:[%s2 + $0x88] sm:$0xff]
      %v1897 = vld [vmem:[%s2 + $0x90] sm:$0xff]
      %v1898 = vld [vmem:[%s2 + $0x98] sm:$0xff]
      %v1899 = vld [vmem:[%s2 + $0xa0] sm:$0xff]
      %v1900 = vld [vmem:[%s2 + $0xa8] sm:$0xff]
      %v1901 = vld [vmem:[%s2 + $0xb0] sm:$0xff]
      %v1902 = vld [vmem:[%s2 + $0xb8] sm:$0xff]
      %v1903 = vld [vmem:[%s2 + $0xc0] sm:$0xff]
      %v1904 = vld [vmem:[%s2 + $0xc8] sm:$0xff]
      %v1905 = vld [vmem:[%s2 + $0xd0] sm:$0xff]
      %v1906 = vld [vmem:[%s2 + $0xd8] sm:$0xff]
      %v1907 = vld [vmem:[%s2 + $0xe0] sm:$0xff]
      %v1908 = vld [vmem:[%s2 + $0xe8] sm:$0xff]
      %v1909 = vld [vmem:[%s2 + $0xf0] sm:$0xff]
      %v1910 = vld [vmem:[%s2 + $0xf8] sm:$0xff]
      %v1911 = vld [vmem:[%s2 + $0x100] sm:$0xff]
      %v1912 = vld [vmem:[%s2 + $0x108] sm:$0xff]
      %v1913 = vld [vmem:[%s2 + $0x110] sm:$0xff]
      %v1914 = vld [vmem:[%s2 + $0x118] sm:$0xff]
      %v1915 = vld [vmem:[%s2 + $0x120] sm:$0xff]
      %v1916 = vld [vmem:[%s2 + $0x128] sm:$0xff]
      %v1917 = vld [vmem:[%s2 + $0x130] sm:$0xff]
      %v1918 = vld [vmem:[%s2 + $0x138] sm:$0xff]
      %v1919 = vld [vmem:[%s2 + $0x140] sm:$0xff]
      %v1920 = vld [vmem:[%s2 + $0x148] sm:$0xff]
      %v1921 = vld [vmem:[%s2 + $0x150] sm:$0xff]
      %v1922 = vld [vmem:[%s2 + $0x158] sm:$0xff]
      %v1923 = vld [vmem:[%s2 + $0x160] sm:$0xff]
      %v1924 = vld [vmem:[%s2 + $0x168] sm:$0xff]
      %v1925 = vld [vmem:[%s2 + $0x170] sm:$0xff]
      %v1926 = vld [vmem:[%s2 + $0x178] sm:$0xff]
      %v1927 = vld [vmem:[%s2 + $0x180] sm:$0xff]
      %v1928 = vld [vmem:[%s2 + $0x188] sm:$0xff]
      %v1929 = vld [vmem:[%s2 + $0x190] sm:$0xff]
      %v1930 = vld [vmem:[%s2 + $0x198] sm:$0xff]
      %v1931 = vld [vmem:[%s2 + $0x1a0] sm:$0xff]
      %v1932 = vld [vmem:[%s2 + $0x1a8] sm:$0xff]
      %v1933 = vld [vmem:[%s2 + $0x1b0] sm:$0xff]
      %v1934 = vld [vmem:[%s2 + $0x1b8] sm:$0xff]
      %v1935 = vld [vmem:[%s2 + $0x1c0] sm:$0xff]
      %v1936 = vld [vmem:[%s2 + $0x1c8] sm:$0xff]
      %v1937 = vld [vmem:[%s2 + $0x1d0] sm:$0xff]
      %v1938 = vld [vmem:[%s2 + $0x1d8] sm:$0xff]
      %v1939 = vld [vmem:[%s2 + $0x1e0] sm:$0xff]
      %v1940 = vld [vmem:[%s2 + $0x1e8] sm:$0xff]
      %v1941 = vld [vmem:[%s2 + $0x1f0] sm:$0xff]
      %v1942 = vld [vmem:[%s2 + $0x1f8] sm:$0xff]
      %v1943 = vld [vmem:[%s2 + $0x200] sm:$0xff]
      %v1944 = vld [vmem:[%s2 + $0x208] sm:$0xff]
      %v1945 = vld [vmem:[%s2 + $0x210] sm:$0xff]
      %v1946 = vld [vmem:[%s2 + $0x218] sm:$0xff]
      %v1947 = vld [vmem:[%s2 + $0x220] sm:$0xff]
      %v1948 = vld [vmem:[%s2 + $0x228] sm:$0xff]
      %v1949 = vld [vmem:[%s2 + $0x230] sm:$0xff]
      %v1950 = vld [vmem:[%s2 + $0x238] sm:$0xff]
      %v1951 = vld [vmem:[%s2 + $0x240] sm:$0xff]
      %v1952 = vld [vmem:[%s2 + $0x248] sm:$0xff]
      %v1953 = vld [vmem:[%s2 + $0x250] sm:$0xff]
      %v1954 = vld [vmem:[%s2 + $0x258] sm:$0xff]
      %v1955 = vld [vmem:[%s2 + $0x260] sm:$0xff]
      %v1956 = vld [vmem:[%s2 + $0x268] sm:$0xff]
      %v1957 = vld [vmem:[%s2 + $0x270] sm:$0xff]
      %v1958 = vld [vmem:[%s2 + $0x278] sm:$0xff]
      %v1959 = vld [vmem:[%s2 + $0x280] sm:$0xff]
      %v1960 = vld [vmem:[%s2 + $0x288] sm:$0xff]
      %v1961 = vld [vmem:[%s2 + $0x290] sm:$0xff]
      %v1962 = vld [vmem:[%s2 + $0x298] sm:$0xff]
      %v1963 = vld [vmem:[%s2 + $0x2a0] sm:$0xff]
      %v1964 = vld [vmem:[%s2 + $0x2a8] sm:$0xff]
      %v1965 = vld [vmem:[%s2 + $0x2b0] sm:$0xff]
      %v1966 = vld [vmem:[%s2 + $0x2b8] sm:$0xff]
      %v1967 = vld [vmem:[%s2 + $0x2c0] sm:$0xff]
      %v1968 = vld [vmem:[%s2 + $0x2c8] sm:$0xff]
      %v1969 = vld [vmem:[%s2 + $0x2d0] sm:$0xff]
      %v1970 = vld [vmem:[%s2 + $0x2d8] sm:$0xff]
      %v1971 = vld [vmem:[%s2 + $0x2e0] sm:$0xff]
      %v1972 = vld [vmem:[%s2 + $0x2e8] sm:$0xff]
      %v1973 = vld [vmem:[%s2 + $0x2f0] sm:$0xff]
      %v1974 = vld [vmem:[%s2 + $0x2f8] sm:$0xff]
      %1975 = vmatprep.subr.mxu0 0.0
      %1976 = vmatpush1.msra.mxu0 %v1751
      %1977 = vmatprep.subr.mxu0 0.0
      %1978 = vmatpush1.msra.mxu0 %v1752
      %1979 = vmatprep.subr.mxu0 0.0
      %1980 = vmatpush1.msra.mxu0 %v1753
      %1981 = vmatprep.subr.mxu0 0.0
      %1982 = vmatpush1.msra.mxu0 %v1754
      %1983 = vmatprep.subr.mxu0 0.0
      %1984 = vmatpush1.msra.mxu0 %v1755
      %1985 = vmatprep.subr.mxu0 0.0
      %1986 = vmatpush1.msra.mxu0 %v1756
      %1987 = vmatprep.subr.mxu0 0.0
      %1988 = vmatpush1.msra.mxu0 %v1757
      %1989 = vmatprep.subr.mxu0 0.0
      %1990 = vmatpush1.msra.mxu0 %v1758
      %1991 = vmatprep.subr.mxu0 0.0
      %1992 = vmatpush1.msra.mxu0 %v1759
      %1993 = vmatprep.subr.mxu0 0.0
      %1994 = vmatpush1.msra.mxu0 %v1760
      %1995 = vmatprep.subr.mxu0 0.0
      %1996 = vmatpush1.msra.mxu0 %v1761
      %1997 = vmatprep.subr.mxu0 0.0
      %1998 = vmatpush1.msra.mxu0 %v1762
      %1999 = vmatprep.subr.mxu0 0.0
      %2000 = vmatpush1.msra.mxu0 %v1763
      %2001 = vmatprep.subr.mxu0 0.0
      %2002 = vmatpush1.msra.mxu0 %v1764
      %2003 = vmatprep.subr.mxu0 0.0
      %2004 = vmatpush1.msra.mxu0 %v1765
      %2005 = vmatprep.subr.mxu0 0.0
      %2006 = vmatpush1.msra.mxu0 %v1766
      %2007 = vmatprep.subr.mxu0 0.0
      %2008 = vmatpush1.msra.mxu0 %v1767
      %2009 = vmatprep.subr.mxu0 0.0
      %2010 = vmatpush1.msra.mxu0 %v1768
      %2011 = vmatprep.subr.mxu0 0.0
      %2012 = vmatpush1.msra.mxu0 %v1769
      %2013 = vmatprep.subr.mxu0 0.0
      %2014 = vmatpush1.msra.mxu0 %v1770
      %2015 = vmatprep.subr.mxu0 0.0
      %2016 = vmatpush1.msra.mxu0 %v1771
      %2017 = vmatprep.subr.mxu0 0.0
      %2018 = vmatpush1.msra.mxu0 %v1772
      %2019 = vmatprep.subr.mxu0 0.0
      %2020 = vmatpush1.msra.mxu0 %v1773
      %2021 = vmatprep.subr.mxu0 0.0
      %2022 = vmatpush1.msra.mxu0 %v1774
      %2023 = vmatprep.subr.mxu0 0.0
      %2024 = vmatpush1.msra.mxu0 %v1775
      %2025 = vmatprep.subr.mxu0 0.0
      %2026 = vmatpush1.msra.mxu0 %v1776
      %2027 = vmatprep.subr.mxu0 0.0
      %2028 = vmatpush1.msra.mxu0 %v1777
      %2029 = vmatprep.subr.mxu0 0.0
      %2030 = vmatpush1.msra.mxu0 %v1778
      %2031 = vmatprep.subr.mxu0 0.0
      %2032 = vmatpush1.msra.mxu0 %v1779
      %2033 = vmatprep.subr.mxu0 0.0
      %2034 = vmatpush1.msra.mxu0 %v1780
      %2035 = vmatprep.subr.mxu0 0.0
      %2036 = vmatpush1.msra.mxu0 %v1781
      %2037 = vmatprep.subr.mxu0 0.0
      %2038 = vmatpush1.msra.mxu0 %v1782
      %2039 = vmatprep.mubr.f32.mxu0 %v1880
      %2040 = vmatmul.mubr.f32.gmra.mrb[0].mxu0 %v1879
      %v2041 = vpop.f32.mrb[0].mxu0
      %v2042 = vadd.f32 0.0, %v2041
      %v2043 = vpop.f32.mrb[0].mxu0
      %2044 = vmatprep.mubr.f32.mxu0 %v1888
      %2045 = vmatmul.mubr.f32.gmra.mrb[0].mxu0 %v1887
      %v2046 = vpop.f32.mrb[0].mxu0
      %v2047 = vadd.f32 0.0, %v2046
      %v2048 = vpop.f32.mrb[0].mxu0
      %2049 = vmatprep.mubr.f32.mxu0 %v1896
      %2050 = vmatmul.mubr.f32.gmra.mrb[0].mxu0 %v1895
      %v2051 = vpop.f32.mrb[0].mxu0
      %v2052 = vadd.f32 0.0, %v2051
      %v2053 = vpop.f32.mrb[0].mxu0
      %2054 = vmatprep.mubr.f32.mxu0 %v1904
      %2055 = vmatmul.mubr.f32.gmra.mrb[0].mxu0 %v1903
      %v2056 = vpop.f32.mrb[0].mxu0
      %v2057 = vadd.f32 0.0, %v2056
      %v2058 = vpop.f32.mrb[0].mxu0
      %2059 = vmatprep.mubr.f32.mxu0 %v1912
      %2060 = vmatmul.mubr.f32.gmra.mrb[0].mxu0 %v1911
      %v2061 = vpop.f32.mrb[0].mxu0
      %v2062 = vadd.f32 0.0, %v2061
      %v2063 = vpop.f32.mrb[0].mxu0
      %2064 = vmatprep.mubr.f32.mxu0 %v1920
      %2065 = vmatmul.mubr.f32.gmra.mrb[0].mxu0 %v1919
      %v2066 = vpop.f32.mrb[0].mxu0
      %v2067 = vadd.f32 0.0, %v2066
      %v2068 = vpop.f32.mrb[0].mxu0
      %2069 = vmatprep.mubr.f32.mxu0 %v1928
      %2070 = vmatmul.mubr.f32.gmra.mrb[0].mxu0 %v1927
      %v2071 = vpop.f32.mrb[0].mxu0
      %v2072 = vadd.f32 0.0, %v2071
      %v2073 = vpop.f32.mrb[0].mxu0
      %2074 = vmatprep.mubr.f32.mxu0 %v1936
      %2075 = vmatmul.mubr.f32.gmra.mrb[0].mxu0 %v1935
      %v2076 = vpop.f32.mrb[0].mxu0
      %v2077 = vadd.f32 0.0, %v2076
      %v2078 = vpop.f32.mrb[0].mxu0
      %2079 = vmatprep.mubr.f32.mxu0 %v1944
      %2080 = vmatmul.mubr.f32.gmra.mrb[0].mxu0 %v1943
      %v2081 = vpop.f32.mrb[0].mxu0
      %v2082 = vadd.f32 0.0, %v2081
      %v2083 = vpop.f32.mrb[0].mxu0
      %2084 = vmatprep.mubr.f32.mxu0 %v1952
      %2085 = vmatmul.mubr.f32.gmra.mrb[0].mxu0 %v1951
      %v2086 = vpop.f32.mrb[0].mxu0
      %v2087 = vadd.f32 0.0, %v2086
      %v2088 = vpop.f32.mrb[0].mxu0
      %2089 = vmatprep.mubr.f32.mxu0 %v1960
      %2090 = vmatmul.mubr.f32.gmra.mrb[0].mxu0 %v1959
      %v2091 = vpop.f32.mrb[0].mxu0
      %v2092 = vadd.f32 0.0, %v2091
      %v2093 = vpop.f32.mrb[0].mxu0
      %2094 = vmatprep.mubr.f32.mxu0 %v1968
      %2095 = vmatmul.mubr.f32.gmra.mrb[0].mxu0 %v1967
      %v2096 = vpop.f32.mrb[0].mxu0
      %v2097 = vadd.f32 0.0, %v2096
      %v2098 = vpop.f32.mrb[0].mxu0
      %2099 = vdwg.mxu0
      %2100 = vmatprep.subr.mxu0 0.0
      %2101 = vmatpush1.msra.mxu0 %v1783
      %2102 = vmatprep.subr.mxu0 0.0
      %2103 = vmatpush1.msra.mxu0 %v1784
      %2104 = vmatprep.subr.mxu0 0.0
      %2105 = vmatpush1.msra.mxu0 %v1785
      %2106 = vmatprep.subr.mxu0 0.0
      %2107 = vmatpush1.msra.mxu0 %v1786
      %2108 = vmatprep.subr.mxu0 0.0
      %2109 = vmatpush1.msra.mxu0 %v1787
      %2110 = vmatprep.subr.mxu0 0.0
      %2111 = vmatpush1.msra.mxu0 %v1788
      %2112 = vmatprep.subr.mxu0 0.0
      %2113 = vmatpush1.msra.mxu0 %v1789
      %2114 = vmatprep.subr.mxu0 0.0
      %2115 = vmatpush1.msra.mxu0 %v1790
      %2116 = vmatprep.subr.mxu0 0.0
      %2117 = vmatpush1.msra.mxu0 %v1791
      %2118 = vmatprep.subr.mxu0 0.0
      %2119 = vmatpush1.msra.mxu0 %v1792
      %2120 = vmatprep.subr.mxu0 0.0
      %2121 = vmatpush1.msra.mxu0 %v1793
      %2122 = vmatprep.subr.mxu0 0.0
      %2123 = vmatpush1.msra.mxu0 %v1794
      %2124 = vmatprep.subr.mxu0 0.0
      %2125 = vmatpush1.msra.mxu0 %v1795
      %2126 = vmatprep.subr.mxu0 0.0
      %2127 = vmatpush1.msra.mxu0 %v1796
      %2128 = vmatprep.subr.mxu0 0.0
      %2129 = vmatpush1.msra.mxu0 %v1797
      %2130 = vmatprep.subr.mxu0 0.0
      %2131 = vmatpush1.msra.mxu0 %v1798
      %2132 = vmatprep.subr.mxu0 0.0
      %2133 = vmatpush1.msra.mxu0 %v1799
      %2134 = vmatprep.subr.mxu0 0.0
      %2135 = vmatpush1.msra.mxu0 %v1800
      %2136 = vmatprep.subr.mxu0 0.0
      %2137 = vmatpush1.msra.mxu0 %v1801
      %2138 = vmatprep.subr.mxu0 0.0
      %2139 = vmatpush1.msra.mxu0 %v1802
      %2140 = vmatprep.subr.mxu0 0.0
      %2141 = vmatpush1.msra.mxu0 %v1803
      %2142 = vmatprep.subr.mxu0 0.0
      %2143 = vmatpush1.msra.mxu0 %v1804
      %2144 = vmatprep.subr.mxu0 0.0
      %2145 = vmatpush1.msra.mxu0 %v1805
      %2146 = vmatprep.subr.mxu0 0.0
      %2147 = vmatpush1.msra.mxu0 %v1806
      %2148 = vmatprep.subr.mxu0 0.0
      %2149 = vmatpush1.msra.mxu0 %v1807
      %2150 = vmatprep.subr.mxu0 0.0
      %2151 = vmatpush1.msra.mxu0 %v1808
      %2152 = vmatprep.subr.mxu0 0.0
      %2153 = vmatpush1.msra.mxu0 %v1809
      %2154 = vmatprep.subr.mxu0 0.0
      %2155 = vmatpush1.msra.mxu0 %v1810
      %2156 = vmatprep.subr.mxu0 0.0
      %2157 = vmatpush1.msra.mxu0 %v1811
      %2158 = vmatprep.subr.mxu0 0.0
      %2159 = vmatpush1.msra.mxu0 %v1812
      %2160 = vmatprep.subr.mxu0 0.0
      %2161 = vmatpush1.msra.mxu0 %v1813
      %2162 = vmatprep.subr.mxu0 0.0
      %2163 = vmatpush1.msra.mxu0 %v1814
      %2164 = vmatprep.mubr.f32.mxu0 %v1882
      %2165 = vmatmul.mubr.f32.gmra.mrb[0].mxu0 %v1881
      %v2166 = vpop.f32.mrb[0].mxu0
      %v2167 = vadd.f32 %v2042, %v2166
      %v2168 = vpop.f32.mrb[0].mxu0
      %2169 = vmatprep.mubr.f32.mxu0 %v1890
      %2170 = vmatmul.mubr.f32.gmra.mrb[0].mxu0 %v1889
      %v2171 = vpop.f32.mrb[0].mxu0
      %v2172 = vadd.f32 %v2047, %v2171
      %v2173 = vpop.f32.mrb[0].mxu0
      %2174 = vmatprep.mubr.f32.mxu0 %v1898
      %2175 = vmatmul.mubr.f32.gmra.mrb[0].mxu0 %v1897
      %v2176 = vpop.f32.mrb[0].mxu0
      %v2177 = vadd.f32 %v2052, %v2176
      %v2178 = vpop.f32.mrb[0].mxu0
      %2179 = vmatprep.mubr.f32.mxu0 %v1906
      %2180 = vmatmul.mubr.f32.gmra.mrb[0].mxu0 %v1905
      %v2181 = vpop.f32.mrb[0].mxu0
      %v2182 = vadd.f32 %v2057, %v2181
      %v2183 = vpop.f32.mrb[0].mxu0
      %2184 = vmatprep.mubr.f32.mxu0 %v1914
      %2185 = vmatmul.mubr.f32.gmra.mrb[0].mxu0 %v1913
      %v2186 = vpop.f32.mrb[0].mxu0
      %v2187 = vadd.f32 %v2062, %v2186
      %v2188 = vpop.f32.mrb[0].mxu0
      %2189 = vmatprep.mubr.f32.mxu0 %v1922
      %2190 = vmatmul.mubr.f32.gmra.mrb[0].mxu0 %v1921
      %v2191 = vpop.f32.mrb[0].mxu0
      %v2192 = vadd.f32 %v2067, %v2191
      %v2193 = vpop.f32.mrb[0].mxu0
      %2194 = vmatprep.mubr.f32.mxu0 %v1930
      %2195 = vmatmul.mubr.f32.gmra.mrb[0].mxu0 %v1929
      %v2196 = vpop.f32.mrb[0].mxu0
      %v2197 = vadd.f32 %v2072, %v2196
      %v2198 = vpop.f32.mrb[0].mxu0
      %2199 = vmatprep.mubr.f32.mxu0 %v1938
      %2200 = vmatmul.mubr.f32.gmra.mrb[0].mxu0 %v1937
      %v2201 = vpop.f32.mrb[0].mxu0
      %v2202 = vadd.f32 %v2077, %v2201
      %v2203 = vpop.f32.mrb[0].mxu0
      %2204 = vmatprep.mubr.f32.mxu0 %v1946
      %2205 = vmatmul.mubr.f32.gmra.mrb[0].mxu0 %v1945
      %v2206 = vpop.f32.mrb[0].mxu0
      %v2207 = vadd.f32 %v2082, %v2206
      %v2208 = vpop.f32.mrb[0].mxu0
      %2209 = vmatprep.mubr.f32.mxu0 %v1954
      %2210 = vmatmul.mubr.f32.gmra.mrb[0].mxu0 %v1953
      %v2211 = vpop.f32.mrb[0].mxu0
      %v2212 = vadd.f32 %v2087, %v2211
      %v2213 = vpop.f32.mrb[0].mxu0
      %2214 = vmatprep.mubr.f32.mxu0 %v1962
      %2215 = vmatmul.mubr.f32.gmra.mrb[0].mxu0 %v1961
      %v2216 = vpop.f32.mrb[0].mxu0
      %v2217 = vadd.f32 %v2092, %v2216
      %v2218 = vpop.f32.mrb[0].mxu0
      %2219 = vmatprep.mubr.f32.mxu0 %v1970
      %2220 = vmatmul.mubr.f32.gmra.mrb[0].mxu0 %v1969
      %v2221 = vpop.f32.mrb[0].mxu0
      %v2222 = vadd.f32 %v2097, %v2221
      %v2223 = vpop.f32.mrb[0].mxu0
      %2224 = vdwg.mxu0
      %2225 = vmatprep.subr.mxu0 0.0
      %2226 = vmatpush1.msra.mxu0 %v1815
      %2227 = vmatprep.subr.mxu0 0.0
      %2228 = vmatpush1.msra.mxu0 %v1816
      %2229 = vmatprep.subr.mxu0 0.0
      %2230 = vmatpush1.msra.mxu0 %v1817
      %2231 = vmatprep.subr.mxu0 0.0
      %2232 = vmatpush1.msra.mxu0 %v1818
      %2233 = vmatprep.subr.mxu0 0.0
      %2234 = vmatpush1.msra.mxu0 %v1819
      %2235 = vmatprep.subr.mxu0 0.0
      %2236 = vmatpush1.msra.mxu0 %v1820
      %2237 = vmatprep.subr.mxu0 0.0
      %2238 = vmatpush1.msra.mxu0 %v1821
      %2239 = vmatprep.subr.mxu0 0.0
      %2240 = vmatpush1.msra.mxu0 %v1822
      %2241 = vmatprep.subr.mxu0 0.0
      %2242 = vmatpush1.msra.mxu0 %v1823
      %2243 = vmatprep.subr.mxu0 0.0
      %2244 = vmatpush1.msra.mxu0 %v1824
      %2245 = vmatprep.subr.mxu0 0.0
      %2246 = vmatpush1.msra.mxu0 %v1825
      %2247 = vmatprep.subr.mxu0 0.0
      %2248 = vmatpush1.msra.mxu0 %v1826
      %2249 = vmatprep.subr.mxu0 0.0
      %2250 = vmatpush1.msra.mxu0 %v1827
      %2251 = vmatprep.subr.mxu0 0.0
      %2252 = vmatpush1.msra.mxu0 %v1828
      %2253 = vmatprep.subr.mxu0 0.0
      %2254 = vmatpush1.msra.mxu0 %v1829
      %2255 = vmatprep.subr.mxu0 0.0
      %2256 = vmatpush1.msra.mxu0 %v1830
      %2257 = vmatprep.subr.mxu0 0.0
      %2258 = vmatpush1.msra.mxu0 %v1831
      %2259 = vmatprep.subr.mxu0 0.0
      %2260 = vmatpush1.msra.mxu0 %v1832
      %2261 = vmatprep.subr.mxu0 0.0
      %2262 = vmatpush1.msra.mxu0 %v1833
      %2263 = vmatprep.subr.mxu0 0.0
      %2264 = vmatpush1.msra.mxu0 %v1834
      %2265 = vmatprep.subr.mxu0 0.0
      %2266 = vmatpush1.msra.mxu0 %v1835
      %2267 = vmatprep.subr.mxu0 0.0
      %2268 = vmatpush1.msra.mxu0 %v1836
      %2269 = vmatprep.subr.mxu0 0.0
      %2270 = vmatpush1.msra.mxu0 %v1837
      %2271 = vmatprep.subr.mxu0 0.0
      %2272 = vmatpush1.msra.mxu0 %v1838
      %2273 = vmatprep.subr.mxu0 0.0
      %2274 = vmatpush1.msra.mxu0 %v1839
      %2275 = vmatprep.subr.mxu0 0.0
      %2276 = vmatpush1.msra.mxu0 %v1840
      %2277 = vmatprep.subr.mxu0 0.0
      %2278 = vmatpush1.msra.mxu0 %v1841
      %2279 = vmatprep.subr.mxu0 0.0
      %2280 = vmatpush1.msra.mxu0 %v1842
      %2281 = vmatprep.subr.mxu0 0.0
      %2282 = vmatpush1.msra.mxu0 %v1843
      %2283 = vmatprep.subr.mxu0 0.0
      %2284 = vmatpush1.msra.mxu0 %v1844
      %2285 = vmatprep.subr.mxu0 0.0
      %2286 = vmatpush1.msra.mxu0 %v1845
      %2287 = vmatprep.subr.mxu0 0.0
      %2288 = vmatpush1.msra.mxu0 %v1846
      %2289 = vmatprep.mubr.f32.mxu0 %v1884
      %2290 = vmatmul.mubr.f32.gmra.mrb[0].mxu0 %v1883
      %v2291 = vpop.f32.mrb[0].mxu0
      %v2292 = vadd.f32 %v2167, %v2291
      %v2293 = vpop.f32.mrb[0].mxu0
      %2294 = vmatprep.mubr.f32.mxu0 %v1892
      %2295 = vmatmul.mubr.f32.gmra.mrb[0].mxu0 %v1891
      %v2296 = vpop.f32.mrb[0].mxu0
      %v2297 = vadd.f32 %v2172, %v2296
      %v2298 = vpop.f32.mrb[0].mxu0
      %2299 = vmatprep.mubr.f32.mxu0 %v1900
      %2300 = vmatmul.mubr.f32.gmra.mrb[0].mxu0 %v1899
      %v2301 = vpop.f32.mrb[0].mxu0
      %v2302 = vadd.f32 %v2177, %v2301
      %v2303 = vpop.f32.mrb[0].mxu0
      %2304 = vmatprep.mubr.f32.mxu0 %v1908
      %2305 = vmatmul.mubr.f32.gmra.mrb[0].mxu0 %v1907
      %v2306 = vpop.f32.mrb[0].mxu0
      %v2307 = vadd.f32 %v2182, %v2306
      %v2308 = vpop.f32.mrb[0].mxu0
      %2309 = vmatprep.mubr.f32.mxu0 %v1916
      %2310 = vmatmul.mubr.f32.gmra.mrb[0].mxu0 %v1915
      %v2311 = vpop.f32.mrb[0].mxu0
      %v2312 = vadd.f32 %v2187, %v2311
      %v2313 = vpop.f32.mrb[0].mxu0
      %2314 = vmatprep.mubr.f32.mxu0 %v1924
      %2315 = vmatmul.mubr.f32.gmra.mrb[0].mxu0 %v1923
      %v2316 = vpop.f32.mrb[0].mxu0
      %v2317 = vadd.f32 %v2192, %v2316
      %v2318 = vpop.f32.mrb[0].mxu0
      %2319 = vmatprep.mubr.f32.mxu0 %v1932
      %2320 = vmatmul.mubr.f32.gmra.mrb[0].mxu0 %v1931
      %v2321 = vpop.f32.mrb[0].mxu0
      %v2322 = vadd.f32 %v2197, %v2321
      %v2323 = vpop.f32.mrb[0].mxu0
      %2324 = vmatprep.mubr.f32.mxu0 %v1940
      %2325 = vmatmul.mubr.f32.gmra.mrb[0].mxu0 %v1939
      %v2326 = vpop.f32.mrb[0].mxu0
      %v2327 = vadd.f32 %v2202, %v2326
      %v2328 = vpop.f32.mrb[0].mxu0
      %2329 = vmatprep.mubr.f32.mxu0 %v1948
      %2330 = vmatmul.mubr.f32.gmra.mrb[0].mxu0 %v1947
      %v2331 = vpop.f32.mrb[0].mxu0
      %v2332 = vadd.f32 %v2207, %v2331
      %v2333 = vpop.f32.mrb[0].mxu0
      %2334 = vmatprep.mubr.f32.mxu0 %v1956
      %2335 = vmatmul.mubr.f32.gmra.mrb[0].mxu0 %v1955
      %v2336 = vpop.f32.mrb[0].mxu0
      %v2337 = vadd.f32 %v2212, %v2336
      %v2338 = vpop.f32.mrb[0].mxu0
      %2339 = vmatprep.mubr.f32.mxu0 %v1964
      %2340 = vmatmul.mubr.f32.gmra.mrb[0].mxu0 %v1963
      %v2341 = vpop.f32.mrb[0].mxu0
      %v2342 = vadd.f32 %v2217, %v2341
      %v2343 = vpop.f32.mrb[0].mxu0
      %2344 = vmatprep.mubr.f32.mxu0 %v1972
      %2345 = vmatmul.mubr.f32.gmra.mrb[0].mxu0 %v1971
      %v2346 = vpop.f32.mrb[0].mxu0
      %v2347 = vadd.f32 %v2222, %v2346
      %v2348 = vpop.f32.mrb[0].mxu0
      %2349 = vdwg.mxu0
      %2350 = vmatprep.subr.mxu0 0.0
      %2351 = vmatpush1.msra.mxu0 %v1847
      %2352 = vmatprep.subr.mxu0 0.0
      %2353 = vmatpush1.msra.mxu0 %v1848
      %2354 = vmatprep.subr.mxu0 0.0
      %2355 = vmatpush1.msra.mxu0 %v1849
      %2356 = vmatprep.subr.mxu0 0.0
      %2357 = vmatpush1.msra.mxu0 %v1850
      %2358 = vmatprep.subr.mxu0 0.0
      %2359 = vmatpush1.msra.mxu0 %v1851
      %2360 = vmatprep.subr.mxu0 0.0
      %2361 = vmatpush1.msra.mxu0 %v1852
      %2362 = vmatprep.subr.mxu0 0.0
      %2363 = vmatpush1.msra.mxu0 %v1853
      %2364 = vmatprep.subr.mxu0 0.0
      %2365 = vmatpush1.msra.mxu0 %v1854
      %2366 = vmatprep.subr.mxu0 0.0
      %2367 = vmatpush1.msra.mxu0 %v1855
      %2368 = vmatprep.subr.mxu0 0.0
      %2369 = vmatpush1.msra.mxu0 %v1856
      %2370 = vmatprep.subr.mxu0 0.0
      %2371 = vmatpush1.msra.mxu0 %v1857
      %2372 = vmatprep.subr.mxu0 0.0
      %2373 = vmatpush1.msra.mxu0 %v1858
      %2374 = vmatprep.subr.mxu0 0.0
      %2375 = vmatpush1.msra.mxu0 %v1859
      %2376 = vmatprep.subr.mxu0 0.0
      %2377 = vmatpush1.msra.mxu0 %v1860
      %2378 = vmatprep.subr.mxu0 0.0
      %2379 = vmatpush1.msra.mxu0 %v1861
      %2380 = vmatprep.subr.mxu0 0.0
      %2381 = vmatpush1.msra.mxu0 %v1862
      %2382 = vmatprep.subr.mxu0 0.0
      %2383 = vmatpush1.msra.mxu0 %v1863
      %2384 = vmatprep.subr.mxu0 0.0
      %2385 = vmatpush1.msra.mxu0 %v1864
      %2386 = vmatprep.subr.mxu0 0.0
      %2387 = vmatpush1.msra.mxu0 %v1865
      %2388 = vmatprep.subr.mxu0 0.0
      %2389 = vmatpush1.msra.mxu0 %v1866
      %2390 = vmatprep.subr.mxu0 0.0
      %2391 = vmatpush1.msra.mxu0 %v1867
      %2392 = vmatprep.subr.mxu0 0.0
      %2393 = vmatpush1.msra.mxu0 %v1868
      %2394 = vmatprep.subr.mxu0 0.0
      %2395 = vmatpush1.msra.mxu0 %v1869
      %2396 = vmatprep.subr.mxu0 0.0
      %2397 = vmatpush1.msra.mxu0 %v1870
      %2398 = vmatprep.subr.mxu0 0.0
      %2399 = vmatpush1.msra.mxu0 %v1871
      %2400 = vmatprep.subr.mxu0 0.0
      %2401 = vmatpush1.msra.mxu0 %v1872
      %2402 = vmatprep.subr.mxu0 0.0
      %2403 = vmatpush1.msra.mxu0 %v1873
      %2404 = vmatprep.subr.mxu0 0.0
      %2405 = vmatpush1.msra.mxu0 %v1874
      %2406 = vmatprep.subr.mxu0 0.0
      %2407 = vmatpush1.msra.mxu0 %v1875
      %2408 = vmatprep.subr.mxu0 0.0
      %2409 = vmatpush1.msra.mxu0 %v1876
      %2410 = vmatprep.subr.mxu0 0.0
      %2411 = vmatpush1.msra.mxu0 %v1877
      %2412 = vmatprep.subr.mxu0 0.0
      %2413 = vmatpush1.msra.mxu0 %v1878
      %2414 = vmatprep.mubr.f32.mxu0 %v1886
      %2415 = vmatmul.mubr.f32.gmra.mrb[0].mxu0 %v1885
      %v2416 = vpop.f32.mrb[0].mxu0
      %v2417 = vadd.f32 %v2292, %v2416
      %v2418 = vpop.f32.mrb[0].mxu0
      %2419 = vmatprep.mubr.f32.mxu0 %v1894
      %2420 = vmatmul.mubr.f32.gmra.mrb[0].mxu0 %v1893
      %v2421 = vpop.f32.mrb[0].mxu0
      %v2422 = vadd.f32 %v2297, %v2421
      %v2423 = vpop.f32.mrb[0].mxu0
      %2424 = vmatprep.mubr.f32.mxu0 %v1902
      %2425 = vmatmul.mubr.f32.gmra.mrb[0].mxu0 %v1901
      %v2426 = vpop.f32.mrb[0].mxu0
      %v2427 = vadd.f32 %v2302, %v2426
      %v2428 = vpop.f32.mrb[0].mxu0
      %2429 = vmatprep.mubr.f32.mxu0 %v1910
      %2430 = vmatmul.mubr.f32.gmra.mrb[0].mxu0 %v1909
      %v2431 = vpop.f32.mrb[0].mxu0
      %v2432 = vadd.f32 %v2307, %v2431
      %v2433 = vpop.f32.mrb[0].mxu0
      %2434 = vmatprep.mubr.f32.mxu0 %v1918
      %2435 = vmatmul.mubr.f32.gmra.mrb[0].mxu0 %v1917
      %v2436 = vpop.f32.mrb[0].mxu0
      %v2437 = vadd.f32 %v2312, %v2436
      %v2438 = vpop.f32.mrb[0].mxu0
      %2439 = vmatprep.mubr.f32.mxu0 %v1926
      %2440 = vmatmul.mubr.f32.gmra.mrb[0].mxu0 %v1925
      %v2441 = vpop.f32.mrb[0].mxu0
      %v2442 = vadd.f32 %v2317, %v2441
      %v2443 = vpop.f32.mrb[0].mxu0
      %2444 = vmatprep.mubr.f32.mxu0 %v1934
      %2445 = vmatmul.mubr.f32.gmra.mrb[0].mxu0 %v1933
      %v2446 = vpop.f32.mrb[0].mxu0
      %v2447 = vadd.f32 %v2322, %v2446
      %v2448 = vpop.f32.mrb[0].mxu0
      %2449 = vmatprep.mubr.f32.mxu0 %v1942
      %2450 = vmatmul.mubr.f32.gmra.mrb[0].mxu0 %v1941
      %v2451 = vpop.f32.mrb[0].mxu0
      %v2452 = vadd.f32 %v2327, %v2451
      %v2453 = vpop.f32.mrb[0].mxu0
      %2454 = vmatprep.mubr.f32.mxu0 %v1950
      %2455 = vmatmul.mubr.f32.gmra.mrb[0].mxu0 %v1949
      %v2456 = vpop.f32.mrb[0].mxu0
      %v2457 = vadd.f32 %v2332, %v2456
      %v2458 = vpop.f32.mrb[0].mxu0
      %2459 = vmatprep.mubr.f32.mxu0 %v1958
      %2460 = vmatmul.mubr.f32.gmra.mrb[0].mxu0 %v1957
      %v2461 = vpop.f32.mrb[0].mxu0
      %v2462 = vadd.f32 %v2337, %v2461
      %v2463 = vpop.f32.mrb[0].mxu0
      %2464 = vmatprep.mubr.f32.mxu0 %v1966
      %2465 = vmatmul.mubr.f32.gmra.mrb[0].mxu0 %v1965
      %v2466 = vpop.f32.mrb[0].mxu0
      %v2467 = vadd.f32 %v2342, %v2466
      %v2468 = vpop.f32.mrb[0].mxu0
      %2469 = vmatprep.mubr.f32.mxu0 %v1974
      %2470 = vmatmul.mubr.f32.gmra.mrb[0].mxu0 %v1973
      %v2471 = vpop.f32.mrb[0].mxu0
      %v2472 = vadd.f32 %v2347, %v2471
      %v2473 = vpop.f32.mrb[0].mxu0
      %2474 = vdwg.mxu0
      %v2475 = vmax.f32 %v2417, 1e-07
      %v2476 = vmax.f32 %v2422, 1e-07
      %v2477 = vmax.f32 %v2427, 1e-07
      %v2478 = vmax.f32 %v2432, 1e-07
      %v2479 = vmax.f32 %v2437, 1e-07
      %v2480 = vmax.f32 %v2442, 1e-07
      %v2481 = vmax.f32 %v2447, 1e-07
      %v2482 = vmax.f32 %v2452, 1e-07
      %v2483 = vmax.f32 %v2457, 1e-07
      %v2484 = vmax.f32 %v2462, 1e-07
      %v2485 = vmax.f32 %v2467, 1e-07
      %v2486 = vmax.f32 %v2472, 1e-07
      %v2487 = vmin.f32 %v2475, 10000.0
      %v2488 = vmin.f32 %v2476, 10000.0
      %v2489 = vmin.f32 %v2477, 10000.0
      %v2490 = vmin.f32 %v2478, 10000.0
      %v2491 = vmin.f32 %v2479, 10000.0
      %v2492 = vmin.f32 %v2480, 10000.0
      %v2493 = vmin.f32 %v2481, 10000.0
      %v2494 = vmin.f32 %v2482, 10000.0
      %v2495 = vmin.f32 %v2483, 10000.0
      %v2496 = vmin.f32 %v2484, 10000.0
      %v2497 = vmin.f32 %v2485, 10000.0
      %v2498 = vmin.f32 %v2486, 10000.0
      %v2499 = vlog2.pop %v2487
      %v2500 = vmul.f32 %v2499, 0.6931472
      %v2501 = vlog2.pop %v2488
      %v2502 = vmul.f32 %v2501, 0.6931472
      %v2503 = vlog2.pop %v2489
      %v2504 = vmul.f32 %v2503, 0.6931472
      %v2505 = vlog2.pop %v2490
      %v2506 = vmul.f32 %v2505, 0.6931472
      %v2507 = vlog2.pop %v2491
      %v2508 = vmul.f32 %v2507, 0.6931472
      %v2509 = vlog2.pop %v2492
      %v2510 = vmul.f32 %v2509, 0.6931472
      %v2511 = vlog2.pop %v2493
      %v2512 = vmul.f32 %v2511, 0.6931472
      %v2513 = vlog2.pop %v2494
      %v2514 = vmul.f32 %v2513, 0.6931472
      %v2515 = vlog2.pop %v2495
      %v2516 = vmul.f32 %v2515, 0.6931472
      %v2517 = vlog2.pop %v2496
      %v2518 = vmul.f32 %v2517, 0.6931472
      %v2519 = vlog2.pop %v2497
      %v2520 = vmul.f32 %v2519, 0.6931472
      %v2521 = vlog2.pop %v2498
      %v2522 = vmul.f32 %v2521, 0.6931472
      %v2523 = vld [vmem:[%s3] sm:$0xff]
      %v2524 = vld [vmem:[%s3 + $0x8] sm:$0xff]
      %v2525 = vld [vmem:[%s3 + $0x10] sm:$0xff]
      %v2526 = vld [vmem:[%s3 + $0x18] sm:$0xff]
      %v2527 = vld [vmem:[%s3 + $0x20] sm:$0xff]
      %vm2528 = vcmask 326656
      %v2530 = vsel %vm2528, %v2500, 0
      %v2533 = vsel %vm2528, %v2502, 0
      %v2536 = vsel %vm2528, %v2504, 0
      %v2539 = vsel %vm2528, %v2506, 0
      %v2542 = vsel %vm2528, %v2508, 0
      %v2545 = vsel %vm2528, %v2510, 0
      %v2548 = vsel %vm2528, %v2512, 0
      %v2551 = vsel %vm2528, %v2514, 0
      %v2554 = vsel %vm2528, %v2516, 0
      %v2557 = vsel %vm2528, %v2518, 0
      %v2560 = vsel %vm2528, %v2520, 0
      %v2563 = vsel %vm2528, %v2522, 0
      %2565 = vmatprep.subr.mxu0 0.0
      %2566 = vmatpush1.msra.mxu0 %v2523
      %2567 = vmatprep.subr.mxu0 0.0
      %2568 = vmatpush1.msra.mxu0 %v2524
      %2569 = vmatprep.subr.mxu0 0.0
      %2570 = vmatpush1.msra.mxu0 %v2525
      %2571 = vmatprep.subr.mxu0 0.0
      %2572 = vmatpush1.msra.mxu0 %v2526
      %2573 = vmatprep.subr.mxu0 0.0
      %2574 = vmatpush1.msra.mxu0 %v2527
      %2575 = vmatprep.subr.mxu0 0.0
      %2576 = vmatpush1.msra.mxu0 0.0
      %2577 = vmatprep.subr.mxu0 0.0
      %2578 = vmatpush1.msra.mxu0 0.0
      %2579 = vmatprep.subr.mxu0 0.0
      %2580 = vmatpush1.msra.mxu0 0.0
      %2581 = vmatprep.subr.mxu0 0.0
      %2582 = vmatpush1.msra.mxu0 0.0
      %2583 = vmatprep.subr.mxu0 0.0
      %2584 = vmatpush1.msra.mxu0 0.0
      %2585 = vmatprep.subr.mxu0 0.0
      %2586 = vmatpush1.msra.mxu0 0.0
      %2587 = vmatprep.subr.mxu0 0.0
      %2588 = vmatpush1.msra.mxu0 0.0
      %2589 = vmatprep.subr.mxu0 0.0
      %2590 = vmatpush1.msra.mxu0 0.0
      %2591 = vmatprep.subr.mxu0 0.0
      %2592 = vmatpush1.msra.mxu0 0.0
      %2593 = vmatprep.subr.mxu0 0.0
      %2594 = vmatpush1.msra.mxu0 0.0
      %2595 = vmatprep.subr.mxu0 0.0
      %2596 = vmatpush1.msra.mxu0 0.0
      %2597 = vmatprep.subr.mxu0 0.0
      %2598 = vmatpush1.msra.mxu0 0.0
      %2599 = vmatprep.subr.mxu0 0.0
      %2600 = vmatpush1.msra.mxu0 0.0
      %2601 = vmatprep.subr.mxu0 0.0
      %2602 = vmatpush1.msra.mxu0 0.0
      %2603 = vmatprep.subr.mxu0 0.0
      %2604 = vmatpush1.msra.mxu0 0.0
      %2605 = vmatprep.subr.mxu0 0.0
      %2606 = vmatpush1.msra.mxu0 0.0
      %2607 = vmatprep.subr.mxu0 0.0
      %2608 = vmatpush1.msra.mxu0 0.0
      %2609 = vmatprep.subr.mxu0 0.0
      %2610 = vmatpush1.msra.mxu0 0.0
      %2611 = vmatprep.subr.mxu0 0.0
      %2612 = vmatpush1.msra.mxu0 0.0
      %2613 = vmatprep.subr.mxu0 0.0
      %2614 = vmatpush1.msra.mxu0 0.0
      %2615 = vmatprep.subr.mxu0 0.0
      %2616 = vmatpush1.msra.mxu0 0.0
      %2617 = vmatprep.subr.mxu0 0.0
      %2618 = vmatpush1.msra.mxu0 0.0
      %2619 = vmatprep.subr.mxu0 0.0
      %2620 = vmatpush1.msra.mxu0 0.0
      %2621 = vmatprep.subr.mxu0 0.0
      %2622 = vmatpush1.msra.mxu0 0.0
      %2623 = vmatprep.subr.mxu0 0.0
      %2624 = vmatpush1.msra.mxu0 0.0
      %2625 = vmatprep.subr.mxu0 0.0
      %2626 = vmatpush1.msra.mxu0 0.0
      %2627 = vmatprep.subr.mxu0 0.0
      %2628 = vmatpush1.msra.mxu0 0.0
      %2629 = vmatprep.mubr.f32.mxu0 0.0
      %2630 = vmatmul.mubr.f32.gmra.mrb[0].mxu0 %v2530
      %v2631 = vpop.f32.mrb[0].mxu0
      %v2632 = vadd.f32 0.0, %v2631
      %v2633 = vpop.f32.mrb[0].mxu0
      %2634 = vmatprep.mubr.f32.mxu0 0.0
      %2635 = vmatmul.mubr.f32.gmra.mrb[0].mxu0 %v2533
      %v2636 = vpop.f32.mrb[0].mxu0
      %v2637 = vadd.f32 0.0, %v2636
      %v2638 = vpop.f32.mrb[0].mxu0
      %2639 = vmatprep.mubr.f32.mxu0 0.0
      %2640 = vmatmul.mubr.f32.gmra.mrb[0].mxu0 %v2536
      %v2641 = vpop.f32.mrb[0].mxu0
      %v2642 = vadd.f32 0.0, %v2641
      %v2643 = vpop.f32.mrb[0].mxu0
      %2644 = vmatprep.mubr.f32.mxu0 0.0
      %2645 = vmatmul.mubr.f32.gmra.mrb[0].mxu0 %v2539
      %v2646 = vpop.f32.mrb[0].mxu0
      %v2647 = vadd.f32 0.0, %v2646
      %v2648 = vpop.f32.mrb[0].mxu0
      %2649 = vmatprep.mubr.f32.mxu0 0.0
      %2650 = vmatmul.mubr.f32.gmra.mrb[0].mxu0 %v2542
      %v2651 = vpop.f32.mrb[0].mxu0
      %v2652 = vadd.f32 0.0, %v2651
      %v2653 = vpop.f32.mrb[0].mxu0
      %2654 = vmatprep.mubr.f32.mxu0 0.0
      %2655 = vmatmul.mubr.f32.gmra.mrb[0].mxu0 %v2545
      %v2656 = vpop.f32.mrb[0].mxu0
      %v2657 = vadd.f32 0.0, %v2656
      %v2658 = vpop.f32.mrb[0].mxu0
      %2659 = vmatprep.mubr.f32.mxu0 0.0
      %2660 = vmatmul.mubr.f32.gmra.mrb[0].mxu0 %v2548
      %v2661 = vpop.f32.mrb[0].mxu0
      %v2662 = vadd.f32 0.0, %v2661
      %v2663 = vpop.f32.mrb[0].mxu0
      %2664 = vmatprep.mubr.f32.mxu0 0.0
      %2665 = vmatmul.mubr.f32.gmra.mrb[0].mxu0 %v2551
      %v2666 = vpop.f32.mrb[0].mxu0
      %v2667 = vadd.f32 0.0, %v2666
      %v2668 = vpop.f32.mrb[0].mxu0
      %2669 = vmatprep.mubr.f32.mxu0 0.0
      %2670 = vmatmul.mubr.f32.gmra.mrb[0].mxu0 %v2554
      %v2671 = vpop.f32.mrb[0].mxu0
      %v2672 = vadd.f32 0.0, %v2671
      %v2673 = vpop.f32.mrb[0].mxu0
      %2674 = vmatprep.mubr.f32.mxu0 0.0
      %2675 = vmatmul.mubr.f32.gmra.mrb[0].mxu0 %v2557
      %v2676 = vpop.f32.mrb[0].mxu0
      %v2677 = vadd.f32 0.0, %v2676
      %v2678 = vpop.f32.mrb[0].mxu0
      %2679 = vmatprep.mubr.f32.mxu0 0.0
      %2680 = vmatmul.mubr.f32.gmra.mrb[0].mxu0 %v2560
      %v2681 = vpop.f32.mrb[0].mxu0
      %v2682 = vadd.f32 0.0, %v2681
      %v2683 = vpop.f32.mrb[0].mxu0
      %2684 = vmatprep.mubr.f32.mxu0 0.0
      %2685 = vmatmul.mubr.f32.gmra.mrb[0].mxu0 %v2563
      %v2686 = vpop.f32.mrb[0].mxu0
      %v2687 = vadd.f32 0.0, %v2686
      %v2688 = vpop.f32.mrb[0].mxu0
      %2689 = vdwg.mxu0
      %v2690 = vld [vmem:[%s4] sm:$0xff]
      %v2691 = vld [vmem:[%s4 + $0x8] sm:$0xff]
      %v2692 = vld [vmem:[%s4 + $0x10] sm:$0xff]
      %v2693 = vld [vmem:[%s4 + $0x18] sm:$0xff]
      %v2694 = vld [vmem:[%s4 + $0x20] sm:$0xff]
      %v2695 = vld [vmem:[%s4 + $0x28] sm:$0xff]
      %v2696 = vld [vmem:[%s4 + $0x30] sm:$0xff]
      %v2697 = vld [vmem:[%s4 + $0x38] sm:$0xff]
      %v2698 = vld [vmem:[%s4 + $0x40] sm:$0xff]
      %v2699 = vld [vmem:[%s4 + $0x48] sm:$0xff]
      %v2700 = vld [vmem:[%s4 + $0x50] sm:$0xff]
      %v2701 = vld [vmem:[%s4 + $0x58] sm:$0xff]
      %v2702 = vmul.f32 %v2632, %v2690
      %v2703 = vmul.f32 %v2637, %v2691
      %v2704 = vmul.f32 %v2642, %v2692
      %v2705 = vmul.f32 %v2647, %v2693
      %v2706 = vmul.f32 %v2652, %v2694
      %v2707 = vmul.f32 %v2657, %v2695
      %v2708 = vmul.f32 %v2662, %v2696
      %v2709 = vmul.f32 %v2667, %v2697
      %v2710 = vmul.f32 %v2672, %v2698
      %v2711 = vmul.f32 %v2677, %v2699
      %v2712 = vmul.f32 %v2682, %v2700
      %v2713 = vmul.f32 %v2687, %v2701
      %v2714 = vld [vmem:[%s5] sm:$0xff]
      %v2715 = vld [vmem:[%s5 + $0x8] sm:$0xff]
      %v2716 = vld [vmem:[%s5 + $0x10] sm:$0xff]
      %v2717 = vld [vmem:[%s5 + $0x18] sm:$0xff]
      %v2718 = vld [vmem:[%s5 + $0x20] sm:$0xff]
      %v2719 = vld [vmem:[%s5 + $0x28] sm:$0xff]
      %vm2720 = vcmask 392192
      %v2722 = vsel %vm2720, %v2702, 0
      %v2725 = vsel %vm2720, %v2703, 0
      %v2728 = vsel %vm2720, %v2704, 0
      %v2731 = vsel %vm2720, %v2705, 0
      %v2734 = vsel %vm2720, %v2706, 0
      %v2737 = vsel %vm2720, %v2707, 0
      %v2740 = vsel %vm2720, %v2708, 0
      %v2743 = vsel %vm2720, %v2709, 0
      %v2746 = vsel %vm2720, %v2710, 0
      %v2749 = vsel %vm2720, %v2711, 0
      %v2752 = vsel %vm2720, %v2712, 0
      %v2755 = vsel %vm2720, %v2713, 0
      %2757 = vmatprep.subr.mxu0 0.0
      %2758 = vmatpush1.msra.mxu0 %v2714
      %2759 = vmatprep.subr.mxu0 0.0
      %2760 = vmatpush1.msra.mxu0 %v2715
      %2761 = vmatprep.subr.mxu0 0.0
      %2762 = vmatpush1.msra.mxu0 %v2716
      %2763 = vmatprep.subr.mxu0 0.0
      %2764 = vmatpush1.msra.mxu0 %v2717
      %2765 = vmatprep.subr.mxu0 0.0
      %2766 = vmatpush1.msra.mxu0 %v2718
      %2767 = vmatprep.subr.mxu0 0.0
      %2768 = vmatpush1.msra.mxu0 %v2719
      %2769 = vmatprep.subr.mxu0 0.0
      %2770 = vmatpush1.msra.mxu0 0.0
      %2771 = vmatprep.subr.mxu0 0.0
      %2772 = vmatpush1.msra.mxu0 0.0
      %2773 = vmatprep.subr.mxu0 0.0
      %2774 = vmatpush1.msra.mxu0 0.0
      %2775 = vmatprep.subr.mxu0 0.0
      %2776 = vmatpush1.msra.mxu0 0.0
      %2777 = vmatprep.subr.mxu0 0.0
      %2778 = vmatpush1.msra.mxu0 0.0
      %2779 = vmatprep.subr.mxu0 0.0
      %2780 = vmatpush1.msra.mxu0 0.0
      %2781 = vmatprep.subr.mxu0 0.0
      %2782 = vmatpush1.msra.mxu0 0.0
      %2783 = vmatprep.subr.mxu0 0.0
      %2784 = vmatpush1.msra.mxu0 0.0
      %2785 = vmatprep.subr.mxu0 0.0
      %2786 = vmatpush1.msra.mxu0 0.0
      %2787 = vmatprep.subr.mxu0 0.0
      %2788 = vmatpush1.msra.mxu0 0.0
      %2789 = vmatprep.subr.mxu0 0.0
      %2790 = vmatpush1.msra.mxu0 0.0
      %2791 = vmatprep.subr.mxu0 0.0
      %2792 = vmatpush1.msra.mxu0 0.0
      %2793 = vmatprep.subr.mxu0 0.0
      %2794 = vmatpush1.msra.mxu0 0.0
      %2795 = vmatprep.subr.mxu0 0.0
      %2796 = vmatpush1.msra.mxu0 0.0
      %2797 = vmatprep.subr.mxu0 0.0
      %2798 = vmatpush1.msra.mxu0 0.0
      %2799 = vmatprep.subr.mxu0 0.0
      %2800 = vmatpush1.msra.mxu0 0.0
      %2801 = vmatprep.subr.mxu0 0.0
      %2802 = vmatpush1.msra.mxu0 0.0
      %2803 = vmatprep.subr.mxu0 0.0
      %2804 = vmatpush1.msra.mxu0 0.0
      %2805 = vmatprep.subr.mxu0 0.0
      %2806 = vmatpush1.msra.mxu0 0.0
      %2807 = vmatprep.subr.mxu0 0.0
      %2808 = vmatpush1.msra.mxu0 0.0
      %2809 = vmatprep.subr.mxu0 0.0
      %2810 = vmatpush1.msra.mxu0 0.0
      %2811 = vmatprep.subr.mxu0 0.0
      %2812 = vmatpush1.msra.mxu0 0.0
      %2813 = vmatprep.subr.mxu0 0.0
      %2814 = vmatpush1.msra.mxu0 0.0
      %2815 = vmatprep.subr.mxu0 0.0
      %2816 = vmatpush1.msra.mxu0 0.0
      %2817 = vmatprep.subr.mxu0 0.0
      %2818 = vmatpush1.msra.mxu0 0.0
      %2819 = vmatprep.subr.mxu0 0.0
      %2820 = vmatpush1.msra.mxu0 0.0
      %2821 = vmatprep.mubr.f32.mxu0 0.0
      %2822 = vmatmul.mubr.f32.gmra.mrb[0].mxu0 %v2722
      %v2823 = vpop.f32.mrb[0].mxu0
      %v2824 = vadd.f32 0.0, %v2823
      %v2825 = vpop.f32.mrb[0].mxu0
      %2826 = vmatprep.mubr.f32.mxu0 0.0
      %2827 = vmatmul.mubr.f32.gmra.mrb[0].mxu0 %v2725
      %v2828 = vpop.f32.mrb[0].mxu0
      %v2829 = vadd.f32 0.0, %v2828
      %v2830 = vpop.f32.mrb[0].mxu0
      %2831 = vmatprep.mubr.f32.mxu0 0.0
      %2832 = vmatmul.mubr.f32.gmra.mrb[0].mxu0 %v2728
      %v2833 = vpop.f32.mrb[0].mxu0
      %v2834 = vadd.f32 0.0, %v2833
      %v2835 = vpop.f32.mrb[0].mxu0
      %2836 = vmatprep.mubr.f32.mxu0 0.0
      %2837 = vmatmul.mubr.f32.gmra.mrb[0].mxu0 %v2731
      %v2838 = vpop.f32.mrb[0].mxu0
      %v2839 = vadd.f32 0.0, %v2838
      %v2840 = vpop.f32.mrb[0].mxu0
      %2841 = vmatprep.mubr.f32.mxu0 0.0
      %2842 = vmatmul.mubr.f32.gmra.mrb[0].mxu0 %v2734
      %v2843 = vpop.f32.mrb[0].mxu0
      %v2844 = vadd.f32 0.0, %v2843
      %v2845 = vpop.f32.mrb[0].mxu0
      %2846 = vmatprep.mubr.f32.mxu0 0.0
      %2847 = vmatmul.mubr.f32.gmra.mrb[0].mxu0 %v2737
      %v2848 = vpop.f32.mrb[0].mxu0
      %v2849 = vadd.f32 0.0, %v2848
      %v2850 = vpop.f32.mrb[0].mxu0
      %2851 = vmatprep.mubr.f32.mxu0 0.0
      %2852 = vmatmul.mubr.f32.gmra.mrb[0].mxu0 %v2740
      %v2853 = vpop.f32.mrb[0].mxu0
      %v2854 = vadd.f32 0.0, %v2853
      %v2855 = vpop.f32.mrb[0].mxu0
      %2856 = vmatprep.mubr.f32.mxu0 0.0
      %2857 = vmatmul.mubr.f32.gmra.mrb[0].mxu0 %v2743
      %v2858 = vpop.f32.mrb[0].mxu0
      %v2859 = vadd.f32 0.0, %v2858
      %v2860 = vpop.f32.mrb[0].mxu0
      %2861 = vmatprep.mubr.f32.mxu0 0.0
      %2862 = vmatmul.mubr.f32.gmra.mrb[0].mxu0 %v2746
      %v2863 = vpop.f32.mrb[0].mxu0
      %v2864 = vadd.f32 0.0, %v2863
      %v2865 = vpop.f32.mrb[0].mxu0
      %2866 = vmatprep.mubr.f32.mxu0 0.0
      %2867 = vmatmul.mubr.f32.gmra.mrb[0].mxu0 %v2749
      %v2868 = vpop.f32.mrb[0].mxu0
      %v2869 = vadd.f32 0.0, %v2868
      %v2870 = vpop.f32.mrb[0].mxu0
      %2871 = vmatprep.mubr.f32.mxu0 0.0
      %2872 = vmatmul.mubr.f32.gmra.mrb[0].mxu0 %v2752
      %v2873 = vpop.f32.mrb[0].mxu0
      %v2874 = vadd.f32 0.0, %v2873
      %v2875 = vpop.f32.mrb[0].mxu0
      %2876 = vmatprep.mubr.f32.mxu0 0.0
      %2877 = vmatmul.mubr.f32.gmra.mrb[0].mxu0 %v2755
      %v2878 = vpop.f32.mrb[0].mxu0
      %v2879 = vadd.f32 0.0, %v2878
      %v2880 = vpop.f32.mrb[0].mxu0
      %2881 = vdwg.mxu0
      %v2882 = vld [vmem:[%s6] sm:$0xff]
      %v2883 = vld [vmem:[%s7] sm:$0x1]
      %v2885 = vlaneseq
      %v2886 = vshrl.u32 %v2885, 7
      %v2887 = vsub.s32 0, %v2886
      %v2888 = vrot.slane %v2883, %v2887
      %vm2890 = vcmask 785408
      %v2892 = vsel %vm2890, %v2882, 0
      %2894 = vmatprep.subr.mxu0 0.0
      %2895 = vmatpush1.msra.mxu0 %v2824
      %2896 = vmatprep.subr.mxu0 0.0
      %2897 = vmatpush1.msra.mxu0 %v2829
      %2898 = vmatprep.subr.mxu0 0.0
      %2899 = vmatpush1.msra.mxu0 %v2834
      %2900 = vmatprep.subr.mxu0 0.0
      %2901 = vmatpush1.msra.mxu0 %v2839
      %2902 = vmatprep.subr.mxu0 0.0
      %2903 = vmatpush1.msra.mxu0 %v2844
      %2904 = vmatprep.subr.mxu0 0.0
      %2905 = vmatpush1.msra.mxu0 %v2849
      %2906 = vmatprep.subr.mxu0 0.0
      %2907 = vmatpush1.msra.mxu0 %v2854
      %2908 = vmatprep.subr.mxu0 0.0
      %2909 = vmatpush1.msra.mxu0 %v2859
      %2910 = vmatprep.subr.mxu0 0.0
      %2911 = vmatpush1.msra.mxu0 %v2864
      %2912 = vmatprep.subr.mxu0 0.0
      %2913 = vmatpush1.msra.mxu0 %v2869
      %2914 = vmatprep.subr.mxu0 0.0
      %2915 = vmatpush1.msra.mxu0 %v2874
      %2916 = vmatprep.subr.mxu0 0.0
      %2917 = vmatpush1.msra.mxu0 %v2879
      %2918 = vmatprep.subr.mxu0 0.0
      %2919 = vmatpush1.msra.mxu0 0.0
      %2920 = vmatprep.subr.mxu0 0.0
      %2921 = vmatpush1.msra.mxu0 0.0
      %2922 = vmatprep.subr.mxu0 0.0
      %2923 = vmatpush1.msra.mxu0 0.0
      %2924 = vmatprep.subr.mxu0 0.0
      %2925 = vmatpush1.msra.mxu0 0.0
      %2926 = vmatprep.subr.mxu0 0.0
      %2927 = vmatpush1.msra.mxu0 0.0
      %2928 = vmatprep.subr.mxu0 0.0
      %2929 = vmatpush1.msra.mxu0 0.0
      %2930 = vmatprep.subr.mxu0 0.0
      %2931 = vmatpush1.msra.mxu0 0.0
      %2932 = vmatprep.subr.mxu0 0.0
      %2933 = vmatpush1.msra.mxu0 0.0
      %2934 = vmatprep.subr.mxu0 0.0
      %2935 = vmatpush1.msra.mxu0 0.0
      %2936 = vmatprep.subr.mxu0 0.0
      %2937 = vmatpush1.msra.mxu0 0.0
      %2938 = vmatprep.subr.mxu0 0.0
      %2939 = vmatpush1.msra.mxu0 0.0
      %2940 = vmatprep.subr.mxu0 0.0
      %2941 = vmatpush1.msra.mxu0 0.0
      %2942 = vmatprep.subr.mxu0 0.0
      %2943 = vmatpush1.msra.mxu0 0.0
      %2944 = vmatprep.subr.mxu0 0.0
      %2945 = vmatpush1.msra.mxu0 0.0
      %2946 = vmatprep.subr.mxu0 0.0
      %2947 = vmatpush1.msra.mxu0 0.0
      %2948 = vmatprep.subr.mxu0 0.0
      %2949 = vmatpush1.msra.mxu0 0.0
      %2950 = vmatprep.subr.mxu0 0.0
      %2951 = vmatpush1.msra.mxu0 0.0
      %2952 = vmatprep.subr.mxu0 0.0
      %2953 = vmatpush1.msra.mxu0 0.0
      %2954 = vmatprep.subr.mxu0 0.0
      %2955 = vmatpush1.msra.mxu0 0.0
      %2956 = vmatprep.subr.mxu0 0.0
      %2957 = vmatpush1.msra.mxu0 0.0
      %2958 = vmatprep.mubr.f32.mxu0 0.0
      %2959 = vmatmul.mubr.f32.gmra.mrb[0].mxu0 %v2892
      %v2960 = vpop.f32.mrb[0].mxu0
      %v2961 = vadd.f32 %v2888, %v2960
      %v2962 = vpop.f32.mrb[0].mxu0
      %2963 = vdwg.mxu0
      %2964 = vmax.xlane.f32.xlu0 %v2961
      %v2965 = vpop.xlane.xlu0 %2964
      %v2966 = vsub.f32 %v2961, %v2965
      %v2967 = vmul.f32 %v2966, 1.442695
      %v2968 = vpow.pop %v2967
      %2969 = vadd.xlane.f32.xlu0 %v2968
      %v2970 = vpop.xlane.xlu0 %2969
      %v2971 = vrcp.pop %v2970
      %v2972 = vmul.f32 %v2968, %v2971
      %2973 = vst [vmem:[%s308] sm:$0xff] %v2972
      %p2974 = scmp.lt.s32.totalorder %s19, 1
      %s2975 = scalar_select %p2974, %s19, 1
      %s2976 = smul.addr %s2975, 8
      %s2977 = scalar_lea.vmem %s8, %s2976
      // Predicated region
      $region53: #{_lambda_.1} parent=51 // pred_check
        %p2978 = pneg %p210
      $region54: #{_lambda_.1} parent=51 // pred_check_branch
        %2980 = sbr.rel (%p2978) target = $region56
      $region55: #{_lambda_.1} parent=51 // pred_region
        _
      $region56: #{_lambda_.1} parent=51 // pred_fallthru
        _
    $region52: #{_lambda_.1} parent=5 // pred_fallthru
      _
    %p2981 = scmp.le.s32.totalorder 2, %s14
    // Predicated region
    $region57: #{_lambda_.1} parent=5 // pred_check
      %p2982 = pneg %p2981
    $region58: #{_lambda_.1} parent=5 // pred_check_branch
      %2984 = sbr.rel (%p2982) target = $region60
    $region59: #{_lambda_.1} parent=5 // pred_region
      %s2985 = ssub.s32 %s14, 2
      // Predicated region
      $region61: #{_lambda_.1} parent=59 // pred_check
        %p2986 = pneg %p216
      $region62: #{_lambda_.1} parent=59 // pred_check_branch
        %2988 = sbr.rel (%p2986) target = $region64
      $region63: #{_lambda_.1} parent=59 // pred_region
        %p2989 = scmp.lt.s32.totalorder %s20, 1
        %s2990 = scalar_select %p2989, %s20, 1
        %s2991 = smul.addr %s2990, 8
        %s2992 = scalar_lea.vmem %s8, %s2991
      $region64: #{_lambda_.1} parent=59 // pred_fallthru
        _
    $region60: #{_lambda_.1} parent=5 // pred_fallthru
      _
  $region6: #{_lambda_.1} parent=0 // loop_footer
    %s18 = sadd.s32 1, %s14
  $region7: #{_lambda_.1} parent=0 // loop_footer_branch
    %13 = sbr.rel target = $region3
  $region8: #{_lambda_.1} parent=0 // loop_exit
    _

</llo_original>
